<compile_context>
chip_gen: v7x
topology: tpu7x:2x2x1
jax: 0.10.0
libtpu: 0.0.40
codegen_flags: <defaults>
</compile_context>

<pallas_src>
import numpy as np
import jax
import jax.numpy as jnp
from jax import lax
from jax.experimental import pallas as pl
from jax.experimental.pallas import tpu as pltpu

# --- module configuration (innermost block: input_nc = outer_nc) -------------
N, IN_C, H, W = 2, 4, 16, 16      # x: (2, 4, 16, 16) NCHW
INNER_C = 8                       # inner_nc
OUT_C = 4                         # outer_nc
HD, WD = H // 2, W // 2           # after 4x4 stride-2 downconv: 8x8
EPS = 1e-5                        # BatchNorm2d eps
C_TOT = IN_C + OUT_C


# -------------------------- operator preparation (host-side, ONCE) -------------
def _upsample_matrix(out_size, in_size):
    """Row-stochastic interp matrix matching nn.Upsample(scale=2, bilinear,
    align_corners=False) (PyTorch clamps negative source coords to 0)."""
    U = np.zeros((out_size, in_size), np.float32)
    for d in range(out_size):
        s = (d + 0.5) * in_size / out_size - 0.5
        s = max(s, 0.0)
        x0 = min(int(np.floor(s)), in_size - 1)
        x1 = min(x0 + 1, in_size - 1)
        f = s - np.floor(s)
        U[d, x0] += 1.0 - f
        U[d, x1] += f
    return U


def prepare_operators(wd_t, wu_t, gamma, beta):
    """Build the small weight-fused operators once (outside jit; weights are static at inference).

    Layout convention inside the kernel: matrices with rows (n, h[d]) and cols (c, w[d]).
      down:  e_kh[(n,h),(co,wd)]  = xlr @ Bw[kh]          Bw[kh]  : (IN_C*W,     INNER_C*WD)
             d[(n,hd),(co,wd)]   += Lh[kh] @ e_kh         Lh[kh]  : (N*HD,       N*H)  block-diag/n
      up:    g_ky[(n,hd),(co,w)]  = r @ Cw[ky]            Cw[ky]  : (INNER_C*WD, OUT_C*W)
             y[(n,h),(co,w)]     += LUh[ky] @ g_ky        LUh[ky] : (N*H,        N*HD) block-diag/n
    """
    wd = np.asarray(wd_t, np.float32)          # (INNER_C, IN_C, 4, 4)  PyTorch OIHW
    wu = np.asarray(wu_t, np.float32)          # (OUT_C, INNER_C, 3, 3)

    # 0/1 spatial selection of the 4x4 / stride-2 / pad-1 downconv (zero padding folded in).
    Dh = np.zeros((4, H, HD), np.float32)
    Dw = np.zeros((4, W, WD), np.float32)
    for k in range(4):
        for od in range(HD):
            src = 2 * od - 1 + k
            if 0 <= src < H:
                Dh[k, src, od] = 1.0
        for od in range(WD):
            src = 2 * od - 1 + k
            if 0 <= src < W:
                Dw[k, src, od] = 1.0
    # Bw[kh][(ci,w),(co,wd)] = sum_kw wd[co,ci,kh,kw] * Dw[kw][w,wd]
    Bw = np.einsum('oihk,kwd->hiwod', wd, Dw).reshape(4, IN_C * W, INNER_C * WD)
    Lh = np.stack([np.kron(np.eye(N, dtype=np.float32), Dh[k].T) for k in range(4)])  # (4,16,32)

    # Bilinear upsample x2 fused with the 3x3-conv taps (pad=1 folded via the extended rows).
    Uh = _upsample_matrix(H, HD)
    Uw = _upsample_matrix(W, WD)
    Uh_ext = np.zeros((H + 2, HD), np.float32); Uh_ext[1:H + 1] = Uh
    Uw_ext = np.zeros((W + 2, WD), np.float32); Uw_ext[1:W + 1] = Uw
    Uh_shift = np.stack([Uh_ext[k:k + H] for k in range(3)])      # (3, H, HD)
    Uw_shift = np.stack([Uw_ext[k:k + W] for k in range(3)])      # (3, W, WD)
    # Cw[ky][(ci,wd),(co,w)] = sum_kx wu[co,ci,ky,kx] * Uw_shift[kx][w,wd]
    Cw = np.einsum('oiyx,xwd->yidow', wu, Uw_shift).reshape(3, INNER_C * WD, OUT_C * W)
    LUh = np.stack([np.kron(np.eye(N, dtype=np.float32), Uh_shift[k]) for k in range(3)])  # (3,32,16)

    # BatchNorm channel-grouping selectors over the (co, w) column layout.
    selT = np.kron(np.eye(OUT_C, dtype=np.float32), np.ones((1, W), np.float32))  # (OUT_C, OUT_C*W)
    sel = selT.T                                                                  # (OUT_C*W, OUT_C)
    g = np.asarray(gamma, np.float32).reshape(1, OUT_C)
    b = np.asarray(beta, np.float32).reshape(1, OUT_C)

    return tuple(jnp.asarray(a) for a in (Bw, Lh, Cw, LUh, sel, selT, g, b))


# ------------------------------- Pallas kernel --------------------------------
def unet_block_kernel(xr_ref, bw_ref, lh_ref, cw_ref, luh_ref,
                      sel_ref, selt_ref, g_ref, b_ref, o_ref):
    # x in (n,h) x (ci,w) layout: (N*H, IN_C*W) = (32, 64)
    xr = xr_ref[...]
    xlr = jnp.where(xr >= 0, xr, 0.2 * xr)                 # LeakyReLU(0.2) on raw x

    # ---- 4x4 / stride-2 / pad-1 downconv (bias=False), separable per kh tap ----
    d = None
    for kh in range(4):
        e_kh = jnp.dot(xlr, bw_ref[kh], preferred_element_type=jnp.float32)     # (N*H, INNER_C*WD)
        t = jnp.dot(lh_ref[kh], e_kh, preferred_element_type=jnp.float32)       # (N*HD, INNER_C*WD)
        d = t if d is None else d + t
    r = jnp.maximum(d, 0.0)                                # up-path ReLU

    # ---- bilinear upsample x2 + conv3x3 pad1 (bias=False), separable per ky tap ----
    y = None
    for ky in range(3):
        g_ky = jnp.dot(r, cw_ref[ky], preferred_element_type=jnp.float32)       # (N*HD, OUT_C*W)
        t = jnp.dot(luh_ref[ky], g_ky, preferred_element_type=jnp.float32)      # (N*H, OUT_C*W)
        y = t if y is None else y + t

    # ---- BatchNorm2d, training-mode biased batch statistics per channel over (N,H,W) ----
    # Columns of y are (co, w); channel grouping via tiny 0/1 selector matmuls (no in-kernel
    # reshape), all on in-register values (output written exactly once below).
    inv_cnt = 1.0 / float(N * H * W)
    colsum = jnp.sum(y, axis=0, keepdims=True)                                              # (1, OUT_C*W)
    mu = jnp.dot(colsum, sel_ref[...], preferred_element_type=jnp.float32) * inv_cnt        # (1, OUT_C)
    c = y - jnp.dot(mu, selt_ref[...], preferred_element_type=jnp.float32)
    var = jnp.dot(jnp.sum(c * c, axis=0, keepdims=True), sel_ref[...],
                  preferred_element_type=jnp.float32) * inv_cnt                              # (1, OUT_C)
    scale = g_ref[...] * lax.rsqrt(var + EPS)
    ybn = (c * jnp.dot(scale, selt_ref[...], preferred_element_type=jnp.float32)
           + jnp.dot(b_ref[...], selt_ref[...], preferred_element_type=jnp.float32))
    # TODO(synk): running_mean/running_var buffer updates are a training-time side effect with
    # no functional forward output; not reproduced here.

    # ---- concat([x, model(x)], channel) in the (n,h) x (c,w) layout, lane-dense (32,128) ----
    o_ref[:, :IN_C * W] = xr
    o_ref[:, IN_C * W:] = ybn


# ------------------------------- wrapper ---------------------------------------
def _full_spec(shape):
    nd = len(shape)
    return pl.BlockSpec(shape, lambda i, nd=nd: (0,) * nd)


@jax.jit
def unet_skip_block(x, ops):
    """x: (N, IN_C, H, W) NCHW; ops: prepare_operators(...).
    Returns concat([x, model(x)], channel): (N, IN_C+OUT_C, H, W)."""
    Bw, Lh, Cw, LUh, sel, selT, g, b = ops
    # One tiny layout transpose in: rows (n, h), cols (ci, w).
    xr = x.transpose(0, 2, 1, 3).reshape(N * H, IN_C * W)

    out = pl.pallas_call(
        unet_block_kernel,
        out_shape=jax.ShapeDtypeStruct((N * H, C_TOT * W), jnp.float32),
        grid=(1,),
        in_specs=[_full_spec(a.shape) for a in (xr, Bw, Lh, Cw, LUh, sel, selT, g, b)],
        out_specs=_full_spec((N * H, C_TOT * W)),
        compiler_params=pltpu.CompilerParams(dimension_semantics=("arbitrary",)),
    )(xr, Bw, Lh, Cw, LUh, sel, selT, g, b)

    # One tiny layout transpose back to NCHW.
    return out.reshape(N, H, C_TOT, W).transpose(0, 2, 1, 3)


# --------------------------- pure-JAX reference ---------------------------------
def reference(x, wd_t, wu_t, gamma, beta):
    Uh = jnp.asarray(_upsample_matrix(H, HD))
    Uw = jnp.asarray(_upsample_matrix(W, WD))
    xlr = jnp.where(x >= 0, x, 0.2 * x)
    d = lax.conv_general_dilated(xlr, wd_t, (2, 2), ((1, 1), (1, 1)),
                                 dimension_numbers=('NCHW', 'OIHW', 'NCHW'))
    r = jnp.maximum(d, 0.0)
    u = jnp.einsum('Hh,nchw,Ww->ncHW', Uh, r, Uw)
    y = lax.conv_general_dilated(u, wu_t, (1, 1), ((1, 1), (1, 1)),
                                 dimension_numbers=('NCHW', 'OIHW', 'NCHW'))
    mu = y.mean(axis=(0, 2, 3), keepdims=True)
    var = ((y - mu) ** 2).mean(axis=(0, 2, 3), keepdims=True)
    ybn = (y - mu) / jnp.sqrt(var + EPS) * gamma.reshape(1, -1, 1, 1) + beta.reshape(1, -1, 1, 1)
    return jnp.concatenate([x, ybn], axis=1)


if __name__ == "__main__":
    key = jax.random.PRNGKey(0)
    k1, k2, k3 = jax.random.split(key, 3)
    x = jax.random.normal(k1, (N, IN_C, H, W), jnp.float32)
    # Conv weights (PyTorch OIHW), bias=False since norm_layer is BatchNorm2d
    wd_t = 0.1 * jax.random.normal(k2, (INNER_C, IN_C, 4, 4), jnp.float32)
    wu_t = 0.1 * jax.random.normal(k3, (OUT_C, INNER_C, 3, 3), jnp.float32)
    # BatchNorm2d(outer_nc) default affine init
    gamma = jnp.ones((OUT_C,), jnp.float32)
    beta = jnp.zeros((OUT_C,), jnp.float32)

    # One-time, host-side operator preparation (weights are static at inference).
    ops = prepare_operators(wd_t, wu_t, gamma, beta)

    out = jax.block_until_ready(unet_skip_block(x, ops))
    ref = jax.block_until_ready(reference(x, wd_t, wu_t, gamma, beta))
    assert out.shape == (N, IN_C + OUT_C, H, W), out.shape
    np.testing.assert_allclose(np.asarray(out), np.asarray(ref), rtol=2e-4, atol=2e-4)
    print("KERNEL_OK")
</pallas_src>

<mosaic_0001>
module attributes {stable_mosaic.version = 11 : i64} {
  func.func @unet_block_kernel(%arg0: i32, %arg1: memref<32x64xf32, #tpu.memory_space<vmem>>, %arg2: memref<4x64x64xf32, #tpu.memory_space<vmem>>, %arg3: memref<4x16x32xf32, #tpu.memory_space<vmem>>, %arg4: memref<3x64x64xf32, #tpu.memory_space<vmem>>, %arg5: memref<3x32x16xf32, #tpu.memory_space<vmem>>, %arg6: memref<64x4xf32, #tpu.memory_space<vmem>>, %arg7: memref<4x64xf32, #tpu.memory_space<vmem>>, %arg8: memref<1x4xf32, #tpu.memory_space<vmem>>, %arg9: memref<1x4xf32, #tpu.memory_space<vmem>>, %arg10: memref<32x128xf32, #tpu.memory_space<vmem>>) attributes {dimension_semantics = [#tpu.dimension_semantics<arbitrary>], iteration_bounds = array<i64: 1>, scalar_prefetch = 0 : i64, scratch_operands = 0 : i64, tpu.core_type = #tpu.core_type<tc>, window_params = [{pipeline_mode = #tpu.pipeline_mode<synchronous>, transform_indices = @transform_0, window_bounds = array<i64: 32, 64>}, {pipeline_mode = #tpu.pipeline_mode<synchronous>, transform_indices = @transform_1, window_bounds = array<i64: 4, 64, 64>}, {pipeline_mode = #tpu.pipeline_mode<synchronous>, transform_indices = @transform_2, window_bounds = array<i64: 4, 16, 32>}, {pipeline_mode = #tpu.pipeline_mode<synchronous>, transform_indices = @transform_3, window_bounds = array<i64: 3, 64, 64>}, {pipeline_mode = #tpu.pipeline_mode<synchronous>, transform_indices = @transform_4, window_bounds = array<i64: 3, 32, 16>}, {pipeline_mode = #tpu.pipeline_mode<synchronous>, transform_indices = @transform_5, window_bounds = array<i64: 64, 4>}, {pipeline_mode = #tpu.pipeline_mode<synchronous>, transform_indices = @transform_6, window_bounds = array<i64: 4, 64>}, {pipeline_mode = #tpu.pipeline_mode<synchronous>, transform_indices = @transform_7, window_bounds = array<i64: 1, 4>}, {pipeline_mode = #tpu.pipeline_mode<synchronous>, transform_indices = @transform_8, window_bounds = array<i64: 1, 4>}, {pipeline_mode = #tpu.pipeline_mode<synchronous>, transform_indices = @transform_9, window_bounds = array<i64: 32, 128>}]} {
    %c0 = arith.constant 0 : index
    %c0_0 = arith.constant 0 : index
    %0 = vector.load %arg1[%c0, %c0_0] : memref<32x64xf32, #tpu.memory_space<vmem>>, vector<32x64xf32>
    %cst = arith.constant 0.000000e+00 : f32
    %1 = vector.broadcast %cst : f32 to vector<32x64xf32>
    %2 = arith.cmpf oge, %0, %1 : vector<32x64xf32>
    %cst_1 = arith.constant 2.000000e-01 : f32
    %3 = vector.broadcast %cst_1 : f32 to vector<32x64xf32>
    %4 = arith.mulf %3, %0 : vector<32x64xf32>
    %5 = arith.select %2, %0, %4 : vector<32x64xi1>, vector<32x64xf32>
    %c0_2 = arith.constant 0 : index
    %c0_3 = arith.constant 0 : index
    %c0_4 = arith.constant 0 : index
    %6 = vector.load %arg2[%c0_2, %c0_3, %c0_4] : memref<4x64x64xf32, #tpu.memory_space<vmem>>, vector<1x64x64xf32>
    %7 = vector.shape_cast %6 : vector<1x64x64xf32> to vector<64x64xf32>
    %cst_5 = arith.constant dense<0.000000e+00> : vector<32x64xf32>
    %8 = tpu.matmul %5, %7, %cst_5 {dimension_numbers = #tpu.dot_dimension_numbers<[1], [0], [0], [1], [0, 0, 1, 1], [], []>} : vector<32x64xf32>, vector<64x64xf32>, vector<32x64xf32> -> vector<32x64xf32>
    %c0_6 = arith.constant 0 : index
    %c0_7 = arith.constant 0 : index
    %c0_8 = arith.constant 0 : index
    %9 = vector.load %arg3[%c0_6, %c0_7, %c0_8] : memref<4x16x32xf32, #tpu.memory_space<vmem>>, vector<1x16x32xf32>
    %10 = vector.shape_cast %9 : vector<1x16x32xf32> to vector<16x32xf32>
    %cst_9 = arith.constant dense<0.000000e+00> : vector<16x64xf32>
    %11 = tpu.matmul %10, %8, %cst_9 {dimension_numbers = #tpu.dot_dimension_numbers<[1], [0], [0], [1], [0, 0, 1, 1], [], []>} : vector<16x32xf32>, vector<32x64xf32>, vector<16x64xf32> -> vector<16x64xf32>
    %c1 = arith.constant 1 : index
    %c0_10 = arith.constant 0 : index
    %c0_11 = arith.constant 0 : index
    %12 = vector.load %arg2[%c1, %c0_10, %c0_11] : memref<4x64x64xf32, #tpu.memory_space<vmem>>, vector<1x64x64xf32>
    %13 = vector.shape_cast %12 : vector<1x64x64xf32> to vector<64x64xf32>
    %cst_12 = arith.constant dense<0.000000e+00> : vector<32x64xf32>
    %14 = tpu.matmul %5, %13, %cst_12 {dimension_numbers = #tpu.dot_dimension_numbers<[1], [0], [0], [1], [0, 0, 1, 1], [], []>} : vector<32x64xf32>, vector<64x64xf32>, vector<32x64xf32> -> vector<32x64xf32>
    %c1_13 = arith.constant 1 : index
    %c0_14 = arith.constant 0 : index
    %c0_15 = arith.constant 0 : index
    %15 = vector.load %arg3[%c1_13, %c0_14, %c0_15] : memref<4x16x32xf32, #tpu.memory_space<vmem>>, vector<1x16x32xf32>
    %16 = vector.shape_cast %15 : vector<1x16x32xf32> to vector<16x32xf32>
    %cst_16 = arith.constant dense<0.000000e+00> : vector<16x64xf32>
    %17 = tpu.matmul %16, %14, %cst_16 {dimension_numbers = #tpu.dot_dimension_numbers<[1], [0], [0], [1], [0, 0, 1, 1], [], []>} : vector<16x32xf32>, vector<32x64xf32>, vector<16x64xf32> -> vector<16x64xf32>
    %18 = arith.addf %11, %17 : vector<16x64xf32>
    %c2 = arith.constant 2 : index
    %c0_17 = arith.constant 0 : index
    %c0_18 = arith.constant 0 : index
    %19 = vector.load %arg2[%c2, %c0_17, %c0_18] : memref<4x64x64xf32, #tpu.memory_space<vmem>>, vector<1x64x64xf32>
    %20 = vector.shape_cast %19 : vector<1x64x64xf32> to vector<64x64xf32>
    %cst_19 = arith.constant dense<0.000000e+00> : vector<32x64xf32>
    %21 = tpu.matmul %5, %20, %cst_19 {dimension_numbers = #tpu.dot_dimension_numbers<[1], [0], [0], [1], [0, 0, 1, 1], [], []>} : vector<32x64xf32>, vector<64x64xf32>, vector<32x64xf32> -> vector<32x64xf32>
    %c2_20 = arith.constant 2 : index
    %c0_21 = arith.constant 0 : index
    %c0_22 = arith.constant 0 : index
    %22 = vector.load %arg3[%c2_20, %c0_21, %c0_22] : memref<4x16x32xf32, #tpu.memory_space<vmem>>, vector<1x16x32xf32>
    %23 = vector.shape_cast %22 : vector<1x16x32xf32> to vector<16x32xf32>
    %cst_23 = arith.constant dense<0.000000e+00> : vector<16x64xf32>
    %24 = tpu.matmul %23, %21, %cst_23 {dimension_numbers = #tpu.dot_dimension_numbers<[1], [0], [0], [1], [0, 0, 1, 1], [], []>} : vector<16x32xf32>, vector<32x64xf32>, vector<16x64xf32> -> vector<16x64xf32>
    %25 = arith.addf %18, %24 : vector<16x64xf32>
    %c3 = arith.constant 3 : index
    %c0_24 = arith.constant 0 : index
    %c0_25 = arith.constant 0 : index
    %26 = vector.load %arg2[%c3, %c0_24, %c0_25] : memref<4x64x64xf32, #tpu.memory_space<vmem>>, vector<1x64x64xf32>
    %27 = vector.shape_cast %26 : vector<1x64x64xf32> to vector<64x64xf32>
    %cst_26 = arith.constant dense<0.000000e+00> : vector<32x64xf32>
    %28 = tpu.matmul %5, %27, %cst_26 {dimension_numbers = #tpu.dot_dimension_numbers<[1], [0], [0], [1], [0, 0, 1, 1], [], []>} : vector<32x64xf32>, vector<64x64xf32>, vector<32x64xf32> -> vector<32x64xf32>
    %c3_27 = arith.constant 3 : index
    %c0_28 = arith.constant 0 : index
    %c0_29 = arith.constant 0 : index
    %29 = vector.load %arg3[%c3_27, %c0_28, %c0_29] : memref<4x16x32xf32, #tpu.memory_space<vmem>>, vector<1x16x32xf32>
    %30 = vector.shape_cast %29 : vector<1x16x32xf32> to vector<16x32xf32>
    %cst_30 = arith.constant dense<0.000000e+00> : vector<16x64xf32>
    %31 = tpu.matmul %30, %28, %cst_30 {dimension_numbers = #tpu.dot_dimension_numbers<[1], [0], [0], [1], [0, 0, 1, 1], [], []>} : vector<16x32xf32>, vector<32x64xf32>, vector<16x64xf32> -> vector<16x64xf32>
    %32 = arith.addf %25, %31 : vector<16x64xf32>
    %cst_31 = arith.constant 0.000000e+00 : f32
    %33 = vector.broadcast %cst_31 : f32 to vector<16x64xf32>
    %34 = arith.maximumf %32, %33 : vector<16x64xf32>
    %c0_32 = arith.constant 0 : index
    %c0_33 = arith.constant 0 : index
    %c0_34 = arith.constant 0 : index
    %35 = vector.load %arg4[%c0_32, %c0_33, %c0_34] : memref<3x64x64xf32, #tpu.memory_space<vmem>>, vector<1x64x64xf32>
    %36 = vector.shape_cast %35 : vector<1x64x64xf32> to vector<64x64xf32>
    %cst_35 = arith.constant dense<0.000000e+00> : vector<16x64xf32>
    %37 = tpu.matmul %34, %36, %cst_35 {dimension_numbers = #tpu.dot_dimension_numbers<[1], [0], [0], [1], [0, 0, 1, 1], [], []>} : vector<16x64xf32>, vector<64x64xf32>, vector<16x64xf32> -> vector<16x64xf32>
    %c0_36 = arith.constant 0 : index
    %c0_37 = arith.constant 0 : index
    %c0_38 = arith.constant 0 : index
    %38 = vector.load %arg5[%c0_36, %c0_37, %c0_38] : memref<3x32x16xf32, #tpu.memory_space<vmem>>, vector<1x32x16xf32>
    %39 = vector.shape_cast %38 : vector<1x32x16xf32> to vector<32x16xf32>
    %cst_39 = arith.constant dense<0.000000e+00> : vector<32x64xf32>
    %40 = tpu.matmul %39, %37, %cst_39 {dimension_numbers = #tpu.dot_dimension_numbers<[1], [0], [0], [1], [0, 0, 1, 1], [], []>} : vector<32x16xf32>, vector<16x64xf32>, vector<32x64xf32> -> vector<32x64xf32>
    %c1_40 = arith.constant 1 : index
    %c0_41 = arith.constant 0 : index
    %c0_42 = arith.constant 0 : index
    %41 = vector.load %arg4[%c1_40, %c0_41, %c0_42] : memref<3x64x64xf32, #tpu.memory_space<vmem>>, vector<1x64x64xf32>
    %42 = vector.shape_cast %41 : vector<1x64x64xf32> to vector<64x64xf32>
    %cst_43 = arith.constant dense<0.000000e+00> : vector<16x64xf32>
    %43 = tpu.matmul %34, %42, %cst_43 {dimension_numbers = #tpu.dot_dimension_numbers<[1], [0], [0], [1], [0, 0, 1, 1], [], []>} : vector<16x64xf32>, vector<64x64xf32>, vector<16x64xf32> -> vector<16x64xf32>
    %c1_44 = arith.constant 1 : index
    %c0_45 = arith.constant 0 : index
    %c0_46 = arith.constant 0 : index
    %44 = vector.load %arg5[%c1_44, %c0_45, %c0_46] : memref<3x32x16xf32, #tpu.memory_space<vmem>>, vector<1x32x16xf32>
    %45 = vector.shape_cast %44 : vector<1x32x16xf32> to vector<32x16xf32>
    %cst_47 = arith.constant dense<0.000000e+00> : vector<32x64xf32>
    %46 = tpu.matmul %45, %43, %cst_47 {dimension_numbers = #tpu.dot_dimension_numbers<[1], [0], [0], [1], [0, 0, 1, 1], [], []>} : vector<32x16xf32>, vector<16x64xf32>, vector<32x64xf32> -> vector<32x64xf32>
    %47 = arith.addf %40, %46 : vector<32x64xf32>
    %c2_48 = arith.constant 2 : index
    %c0_49 = arith.constant 0 : index
    %c0_50 = arith.constant 0 : index
    %48 = vector.load %arg4[%c2_48, %c0_49, %c0_50] : memref<3x64x64xf32, #tpu.memory_space<vmem>>, vector<1x64x64xf32>
    %49 = vector.shape_cast %48 : vector<1x64x64xf32> to vector<64x64xf32>
    %cst_51 = arith.constant dense<0.000000e+00> : vector<16x64xf32>
    %50 = tpu.matmul %34, %49, %cst_51 {dimension_numbers = #tpu.dot_dimension_numbers<[1], [0], [0], [1], [0, 0, 1, 1], [], []>} : vector<16x64xf32>, vector<64x64xf32>, vector<16x64xf32> -> vector<16x64xf32>
    %c2_52 = arith.constant 2 : index
    %c0_53 = arith.constant 0 : index
    %c0_54 = arith.constant 0 : index
    %51 = vector.load %arg5[%c2_52, %c0_53, %c0_54] : memref<3x32x16xf32, #tpu.memory_space<vmem>>, vector<1x32x16xf32>
    %52 = vector.shape_cast %51 : vector<1x32x16xf32> to vector<32x16xf32>
    %cst_55 = arith.constant dense<0.000000e+00> : vector<32x64xf32>
    %53 = tpu.matmul %52, %50, %cst_55 {dimension_numbers = #tpu.dot_dimension_numbers<[1], [0], [0], [1], [0, 0, 1, 1], [], []>} : vector<32x16xf32>, vector<16x64xf32>, vector<32x64xf32> -> vector<32x64xf32>
    %54 = arith.addf %47, %53 : vector<32x64xf32>
    %cst_56 = arith.constant dense<0.000000e+00> : vector<64xf32>
    %55 = vector.multi_reduction <add>, %54, %cst_56 [0] : vector<32x64xf32> to vector<64xf32>
    %56 = vector.shape_cast %55 : vector<64xf32> to vector<1x64xf32>
    %c0_57 = arith.constant 0 : index
    %c0_58 = arith.constant 0 : index
    %57 = vector.load %arg6[%c0_57, %c0_58] : memref<64x4xf32, #tpu.memory_space<vmem>>, vector<64x4xf32>
    %cst_59 = arith.constant dense<0.000000e+00> : vector<1x4xf32>
    %58 = tpu.matmul %56, %57, %cst_59 {dimension_numbers = #tpu.dot_dimension_numbers<[1], [0], [0], [1], [0, 0, 1, 1], [], []>} : vector<1x64xf32>, vector<64x4xf32>, vector<1x4xf32> -> vector<1x4xf32>
    %cst_60 = arith.constant 0.001953125 : f32
    %59 = vector.broadcast %cst_60 : f32 to vector<1x4xf32>
    %60 = arith.mulf %58, %59 : vector<1x4xf32>
    %c0_61 = arith.constant 0 : index
    %c0_62 = arith.constant 0 : index
    %61 = vector.load %arg7[%c0_61, %c0_62] : memref<4x64xf32, #tpu.memory_space<vmem>>, vector<4x64xf32>
    %cst_63 = arith.constant dense<0.000000e+00> : vector<1x64xf32>
    %62 = tpu.matmul %60, %61, %cst_63 {dimension_numbers = #tpu.dot_dimension_numbers<[1], [0], [0], [1], [0, 0, 1, 1], [], []>} : vector<1x4xf32>, vector<4x64xf32>, vector<1x64xf32> -> vector<1x64xf32>
    %63 = vector.broadcast %62 : vector<1x64xf32> to vector<32x64xf32>
    %64 = arith.subf %54, %63 : vector<32x64xf32>
    %65 = arith.mulf %64, %64 : vector<32x64xf32>
    %cst_64 = arith.constant dense<0.000000e+00> : vector<64xf32>
    %66 = vector.multi_reduction <add>, %65, %cst_64 [0] : vector<32x64xf32> to vector<64xf32>
    %67 = vector.shape_cast %66 : vector<64xf32> to vector<1x64xf32>
    %c0_65 = arith.constant 0 : index
    %c0_66 = arith.constant 0 : index
    %68 = vector.load %arg6[%c0_65, %c0_66] : memref<64x4xf32, #tpu.memory_space<vmem>>, vector<64x4xf32>
    %cst_67 = arith.constant dense<0.000000e+00> : vector<1x4xf32>
    %69 = tpu.matmul %67, %68, %cst_67 {dimension_numbers = #tpu.dot_dimension_numbers<[1], [0], [0], [1], [0, 0, 1, 1], [], []>} : vector<1x64xf32>, vector<64x4xf32>, vector<1x4xf32> -> vector<1x4xf32>
    %cst_68 = arith.constant 0.001953125 : f32
    %70 = vector.broadcast %cst_68 : f32 to vector<1x4xf32>
    %71 = arith.mulf %69, %70 : vector<1x4xf32>
    %c0_69 = arith.constant 0 : index
    %c0_70 = arith.constant 0 : index
    %72 = vector.load %arg8[%c0_69, %c0_70] : memref<1x4xf32, #tpu.memory_space<vmem>>, vector<1x4xf32>
    %cst_71 = arith.constant 9.99999974E-6 : f32
    %73 = vector.broadcast %cst_71 : f32 to vector<1x4xf32>
    %74 = arith.addf %71, %73 : vector<1x4xf32>
    %75 = math.rsqrt %74 : vector<1x4xf32>
    %76 = arith.mulf %72, %75 : vector<1x4xf32>
    %c0_72 = arith.constant 0 : index
    %c0_73 = arith.constant 0 : index
    %77 = vector.load %arg7[%c0_72, %c0_73] : memref<4x64xf32, #tpu.memory_space<vmem>>, vector<4x64xf32>
    %cst_74 = arith.constant dense<0.000000e+00> : vector<1x64xf32>
    %78 = tpu.matmul %76, %77, %cst_74 {dimension_numbers = #tpu.dot_dimension_numbers<[1], [0], [0], [1], [0, 0, 1, 1], [], []>} : vector<1x4xf32>, vector<4x64xf32>, vector<1x64xf32> -> vector<1x64xf32>
    %79 = vector.broadcast %78 : vector<1x64xf32> to vector<32x64xf32>
    %80 = arith.mulf %64, %79 : vector<32x64xf32>
    %c0_75 = arith.constant 0 : index
    %c0_76 = arith.constant 0 : index
    %81 = vector.load %arg9[%c0_75, %c0_76] : memref<1x4xf32, #tpu.memory_space<vmem>>, vector<1x4xf32>
    %c0_77 = arith.constant 0 : index
    %c0_78 = arith.constant 0 : index
    %82 = vector.load %arg7[%c0_77, %c0_78] : memref<4x64xf32, #tpu.memory_space<vmem>>, vector<4x64xf32>
    %cst_79 = arith.constant dense<0.000000e+00> : vector<1x64xf32>
    %83 = tpu.matmul %81, %82, %cst_79 {dimension_numbers = #tpu.dot_dimension_numbers<[1], [0], [0], [1], [0, 0, 1, 1], [], []>} : vector<1x4xf32>, vector<4x64xf32>, vector<1x64xf32> -> vector<1x64xf32>
    %84 = vector.broadcast %83 : vector<1x64xf32> to vector<32x64xf32>
    %85 = arith.addf %80, %84 : vector<32x64xf32>
    %c0_80 = arith.constant 0 : index
    %c0_81 = arith.constant 0 : index
    %86 = vector.load %arg10[%c0_80, %c0_81] : memref<32x128xf32, #tpu.memory_space<vmem>>, vector<32x64xf32>
    tpu.vector_store %arg10[%c0_80, %c0_81], %0 {strides = array<i32>} : memref<32x128xf32, #tpu.memory_space<vmem>>, vector<32x64xf32>,
    %c0_82 = arith.constant 0 : index
    %c64 = arith.constant 64 : index
    %87 = vector.load %arg10[%c0_82, %c64] : memref<32x128xf32, #tpu.memory_space<vmem>>, vector<32x64xf32>
    tpu.vector_store %arg10[%c0_82, %c64], %85 {strides = array<i32>} : memref<32x128xf32, #tpu.memory_space<vmem>>, vector<32x64xf32>,
    return
  }
  func.func @transform_0(%arg0: i32) -> (i32, i32) {
    %c0_i32 = arith.constant 0 : i32
    %c0_i32_0 = arith.constant 0 : i32
    %c0_i32_1 = arith.constant 0 : i32
    return %c0_i32, %c0_i32_0 : i32, i32
  }
  func.func @transform_1(%arg0: i32) -> (i32, i32, i32) {
    %c0_i32 = arith.constant 0 : i32
    %c0_i32_0 = arith.constant 0 : i32
    %c0_i32_1 = arith.constant 0 : i32
    %c0_i32_2 = arith.constant 0 : i32
    return %c0_i32, %c0_i32_0, %c0_i32_1 : i32, i32, i32
  }
  func.func @transform_2(%arg0: i32) -> (i32, i32, i32) {
    %c0_i32 = arith.constant 0 : i32
    %c0_i32_0 = arith.constant 0 : i32
    %c0_i32_1 = arith.constant 0 : i32
    %c0_i32_2 = arith.constant 0 : i32
    return %c0_i32, %c0_i32_0, %c0_i32_1 : i32, i32, i32
  }
  func.func @transform_3(%arg0: i32) -> (i32, i32, i32) {
    %c0_i32 = arith.constant 0 : i32
    %c0_i32_0 = arith.constant 0 : i32
    %c0_i32_1 = arith.constant 0 : i32
    %c0_i32_2 = arith.constant 0 : i32
    return %c0_i32, %c0_i32_0, %c0_i32_1 : i32, i32, i32
  }
  func.func @transform_4(%arg0: i32) -> (i32, i32, i32) {
    %c0_i32 = arith.constant 0 : i32
    %c0_i32_0 = arith.constant 0 : i32
    %c0_i32_1 = arith.constant 0 : i32
    %c0_i32_2 = arith.constant 0 : i32
    return %c0_i32, %c0_i32_0, %c0_i32_1 : i32, i32, i32
  }
  func.func @transform_5(%arg0: i32) -> (i32, i32) {
    %c0_i32 = arith.constant 0 : i32
    %c0_i32_0 = arith.constant 0 : i32
    %c0_i32_1 = arith.constant 0 : i32
    return %c0_i32, %c0_i32_0 : i32, i32
  }
  func.func @transform_6(%arg0: i32) -> (i32, i32) {
    %c0_i32 = arith.constant 0 : i32
    %c0_i32_0 = arith.constant 0 : i32
    %c0_i32_1 = arith.constant 0 : i32
    return %c0_i32, %c0_i32_0 : i32, i32
  }
  func.func @transform_7(%arg0: i32) -> (i32, i32) {
    %c0_i32 = arith.constant 0 : i32
    %c0_i32_0 = arith.constant 0 : i32
    %c0_i32_1 = arith.constant 0 : i32
    return %c0_i32, %c0_i32_0 : i32, i32
  }
  func.func @transform_8(%arg0: i32) -> (i32, i32) {
    %c0_i32 = arith.constant 0 : i32
    %c0_i32_0 = arith.constant 0 : i32
    %c0_i32_1 = arith.constant 0 : i32
    return %c0_i32, %c0_i32_0 : i32, i32
  }
  func.func @transform_9(%arg0: i32) -> (i32, i32) {
    %c0_i32 = arith.constant 0 : i32
    %c0_i32_0 = arith.constant 0 : i32
    %c0_i32_1 = arith.constant 0 : i32
    return %c0_i32, %c0_i32_0 : i32, i32
  }
}

</mosaic_0001>

<llo_original>
// kernel: unet_skip_block.1
$region0: #{unet_skip_block.1}
  #allocation0 [shape = 'u32[]', space=smem, size = 0x4, offset = 0x4, fixed_abs, tag = 'smem constant byte address 0x4 - core index']
  #allocation1 [shape = 'u32[144,128]{1,0:T(1,128)}', space=vmem, size = 0x12000, scoped, tag = 'internal scratch']
  %s0 = inlined_call_operand.vmem [shape: f32[32,64], index: 0, kind: input, shape index: {}]
  %s1 = inlined_call_operand.vmem [shape: f32[4,64,64], index: 1, kind: input, shape index: {}]
  %s2 = inlined_call_operand.hbm [shape: f32[4,16,32], index: 2, kind: input, shape index: {}]
  %s3 = inlined_call_operand.vmem [shape: f32[3,64,64], index: 3, kind: input, shape index: {}]
  %s4 = inlined_call_operand.vmem [shape: f32[3,32,16], index: 4, kind: input, shape index: {}]
  %s5 = inlined_call_operand.vmem [shape: f32[64,4], index: 5, kind: input, shape index: {}]
  %s6 = inlined_call_operand.vmem [shape: f32[4,64], index: 6, kind: input, shape index: {}]
  %s7 = inlined_call_operand.vmem [shape: f32[1,4], index: 7, kind: input, shape index: {}]
  %s8 = inlined_call_operand.vmem [shape: f32[1,4], index: 8, kind: input, shape index: {}]
  %s9 = inlined_call_operand.vmem [shape: f32[32,128], index: 9, kind: output, shape index: {}]
  %s10 = sld [smem:[#allocation0]]
  $region50: #{unet_skip_block.1} parent=0
    _
  %s12 = ssub.s32 1, %s10
  %s13 = scalar_select 0, %s12, %s10
  $region1: #{unet_skip_block.1} parent=0
    #allocation2 [shape = 'u8[32768]{0}', space=vmem, size = 0x8000, scoped, tag = 'input window, operand 2, single buffered']
    #allocation3 [shape = 's32[1]{0}', space=sflag, size = 0x4, scoped, tag = 'scoped memory for unet_skip_block.1']
    %14 = vsyncpa [#allocation3], 0
    // Predicated region
    $region2: #{unet_skip_block.1} parent=1 // pred_check
      _
    $region3: #{unet_skip_block.1} parent=1 // pred_check_branch
      %16 = sbr.rel (0) target = $region5
    $region4: #{unet_skip_block.1} parent=1 // pred_region
      _
    $region5: #{unet_skip_block.1} parent=1 // pred_fallthru
      _
    // Predicated region
    $region6: #{unet_skip_block.1} parent=1 // pred_check
      _
    $region7: #{unet_skip_block.1} parent=1 // pred_check_branch
      %18 = sbr.rel (0) target = $region9
    $region8: #{unet_skip_block.1} parent=1 // pred_region
      _
    $region9: #{unet_skip_block.1} parent=1 // pred_fallthru
      _
    // Predicated region
    $region10: #{unet_skip_block.1} parent=1 // pred_check
      _
    $region11: #{unet_skip_block.1} parent=1 // pred_check_branch
      %20 = sbr.rel (0) target = $region13
    $region12: #{unet_skip_block.1} parent=1 // pred_region
      %s22 = ssub.s32 1024, 1024
      %23 = vsyncadd [#allocation3], %s22
      %s24 = sshll.u32 [#allocation2], 4
      %s25 = int_to_ptr.vmem [resolvable:$true] %s24
      %30 = dma.hbm_to_vmem [thread:$0]  %s2, 1024, %s25, [#allocation3], 128, 128, 8
    $region13: #{unet_skip_block.1} parent=1 // pred_fallthru
      _
    // Predicated region
    $region14: #{unet_skip_block.1} parent=1 // pred_check
      _
    $region15: #{unet_skip_block.1} parent=1 // pred_check_branch
      %32 = sbr.rel (0) target = $region17
    $region16: #{unet_skip_block.1} parent=1 // pred_region
      _
    $region17: #{unet_skip_block.1} parent=1 // pred_fallthru
      _
    // Predicated region
    $region18: #{unet_skip_block.1} parent=1 // pred_check
      _
    $region19: #{unet_skip_block.1} parent=1 // pred_check_branch
      %34 = sbr.rel (0) target = $region21
    $region20: #{unet_skip_block.1} parent=1 // pred_region
      _
    $region21: #{unet_skip_block.1} parent=1 // pred_fallthru
      _
    // Predicated region
    $region22: #{unet_skip_block.1} parent=1 // pred_check
      _
    $region23: #{unet_skip_block.1} parent=1 // pred_check_branch
      %36 = sbr.rel (0) target = $region25
    $region24: #{unet_skip_block.1} parent=1 // pred_region
      _
    $region25: #{unet_skip_block.1} parent=1 // pred_fallthru
      _
    // Predicated region
    $region26: #{unet_skip_block.1} parent=1 // pred_check
      _
    $region27: #{unet_skip_block.1} parent=1 // pred_check_branch
      %38 = sbr.rel (0) target = $region29
    $region28: #{unet_skip_block.1} parent=1 // pred_region
      _
    $region29: #{unet_skip_block.1} parent=1 // pred_fallthru
      _
    // Predicated region
    $region30: #{unet_skip_block.1} parent=1 // pred_check
      _
    $region31: #{unet_skip_block.1} parent=1 // pred_check_branch
      %40 = sbr.rel (0) target = $region33
    $region32: #{unet_skip_block.1} parent=1 // pred_region
      _
    $region33: #{unet_skip_block.1} parent=1 // pred_fallthru
      _
    // Predicated region
    $region34: #{unet_skip_block.1} parent=1 // pred_check
      _
    $region35: #{unet_skip_block.1} parent=1 // pred_check_branch
      %42 = sbr.rel (0) target = $region37
    $region36: #{unet_skip_block.1} parent=1 // pred_region
      _
    $region37: #{unet_skip_block.1} parent=1 // pred_fallthru
      _
    // Predicated region
    $region38: #{unet_skip_block.1} parent=1 // pred_check
      _
    $region39: #{unet_skip_block.1} parent=1 // pred_check_branch
      %44 = sbr.rel (0) target = $region41
    $region40: #{unet_skip_block.1} parent=1 // pred_region
      %45 = dma.done [#allocation3], 1024
    $region41: #{unet_skip_block.1} parent=1 // pred_fallthru
      _
    %v46 = vld [vmem:[%s0] sm:$0xff]
    %v47 = vld [vmem:[%s0 + $0x8] sm:$0xff]
    %v48 = vld [vmem:[%s0 + $0x10] sm:$0xff]
    %v49 = vld [vmem:[%s0 + $0x18] sm:$0xff]
    %vm50 = vcmp.ge.f32.partialorder %v46, 0.0
    %vm51 = vcmp.ge.f32.partialorder %v47, 0.0
    %vm52 = vcmp.ge.f32.partialorder %v48, 0.0
    %vm53 = vcmp.ge.f32.partialorder %v49, 0.0
    %v54 = vmul.f32 %v46, 0.2
    %v55 = vmul.f32 %v47, 0.2
    %v56 = vmul.f32 %v48, 0.2
    %v57 = vmul.f32 %v49, 0.2
    %v58 = vsel %vm50, %v46, %v54
    %v59 = vsel %vm51, %v47, %v55
    %v60 = vsel %vm52, %v48, %v56
    %v61 = vsel %vm53, %v49, %v57
    %v62 = vld [vmem:[%s1] sm:$0xff]
    %v63 = vld [vmem:[%s1 + $0x8] sm:$0xff]
    %v64 = vld [vmem:[%s1 + $0x10] sm:$0xff]
    %v65 = vld [vmem:[%s1 + $0x18] sm:$0xff]
    %v66 = vld [vmem:[%s1 + $0x20] sm:$0xff]
    %v67 = vld [vmem:[%s1 + $0x28] sm:$0xff]
    %v68 = vld [vmem:[%s1 + $0x30] sm:$0xff]
    %v69 = vld [vmem:[%s1 + $0x38] sm:$0xff]
    %vm70 = vcmask 523264
    %v72 = vsel %vm70, %v58, 0
    %v75 = vsel %vm70, %v59, 0
    %v78 = vsel %vm70, %v60, 0
    %v81 = vsel %vm70, %v61, 0
    %83 = vmatprep.subr.mxu0 0.0
    %84 = vmatpush1.msra.mxu0 %v62
    %85 = vmatprep.subr.mxu0 0.0
    %86 = vmatpush1.msra.mxu0 %v63
    %87 = vmatprep.subr.mxu0 0.0
    %88 = vmatpush1.msra.mxu0 %v64
    %89 = vmatprep.subr.mxu0 0.0
    %90 = vmatpush1.msra.mxu0 %v65
    %91 = vmatprep.subr.mxu0 0.0
    %92 = vmatpush1.msra.mxu0 %v66
    %93 = vmatprep.subr.mxu0 0.0
    %94 = vmatpush1.msra.mxu0 %v67
    %95 = vmatprep.subr.mxu0 0.0
    %96 = vmatpush1.msra.mxu0 %v68
    %97 = vmatprep.subr.mxu0 0.0
    %98 = vmatpush1.msra.mxu0 %v69
    %99 = vmatprep.subr.mxu0 0.0
    %100 = vmatpush1.msra.mxu0 0.0
    %101 = vmatprep.subr.mxu0 0.0
    %102 = vmatpush1.msra.mxu0 0.0
    %103 = vmatprep.subr.mxu0 0.0
    %104 = vmatpush1.msra.mxu0 0.0
    %105 = vmatprep.subr.mxu0 0.0
    %106 = vmatpush1.msra.mxu0 0.0
    %107 = vmatprep.subr.mxu0 0.0
    %108 = vmatpush1.msra.mxu0 0.0
    %109 = vmatprep.subr.mxu0 0.0
    %110 = vmatpush1.msra.mxu0 0.0
    %111 = vmatprep.subr.mxu0 0.0
    %112 = vmatpush1.msra.mxu0 0.0
    %113 = vmatprep.subr.mxu0 0.0
    %114 = vmatpush1.msra.mxu0 0.0
    %115 = vmatprep.subr.mxu0 0.0
    %116 = vmatpush1.msra.mxu0 0.0
    %117 = vmatprep.subr.mxu0 0.0
    %118 = vmatpush1.msra.mxu0 0.0
    %119 = vmatprep.subr.mxu0 0.0
    %120 = vmatpush1.msra.mxu0 0.0
    %121 = vmatprep.subr.mxu0 0.0
    %122 = vmatpush1.msra.mxu0 0.0
    %123 = vmatprep.subr.mxu0 0.0
    %124 = vmatpush1.msra.mxu0 0.0
    %125 = vmatprep.subr.mxu0 0.0
    %126 = vmatpush1.msra.mxu0 0.0
    %127 = vmatprep.subr.mxu0 0.0
    %128 = vmatpush1.msra.mxu0 0.0
    %129 = vmatprep.subr.mxu0 0.0
    %130 = vmatpush1.msra.mxu0 0.0
    %131 = vmatprep.subr.mxu0 0.0
    %132 = vmatpush1.msra.mxu0 0.0
    %133 = vmatprep.subr.mxu0 0.0
    %134 = vmatpush1.msra.mxu0 0.0
    %135 = vmatprep.subr.mxu0 0.0
    %136 = vmatpush1.msra.mxu0 0.0
    %137 = vmatprep.subr.mxu0 0.0
    %138 = vmatpush1.msra.mxu0 0.0
    %139 = vmatprep.subr.mxu0 0.0
    %140 = vmatpush1.msra.mxu0 0.0
    %141 = vmatprep.subr.mxu0 0.0
    %142 = vmatpush1.msra.mxu0 0.0
    %143 = vmatprep.subr.mxu0 0.0
    %144 = vmatpush1.msra.mxu0 0.0
    %145 = vmatprep.subr.mxu0 0.0
    %146 = vmatpush1.msra.mxu0 0.0
    %147 = vmatprep.mubr.f32.mxu0 0.0
    %148 = vmatmul.mubr.f32.gmra.mrb[0].mxu0 %v72
    %v149 = vpop.f32.mrb[0].mxu0
    %v150 = vadd.f32 0.0, %v149
    %v151 = vpop.f32.mrb[0].mxu0
    %152 = vmatprep.mubr.f32.mxu0 0.0
    %153 = vmatmul.mubr.f32.gmra.mrb[0].mxu0 %v75
    %v154 = vpop.f32.mrb[0].mxu0
    %v155 = vadd.f32 0.0, %v154
    %v156 = vpop.f32.mrb[0].mxu0
    %157 = vmatprep.mubr.f32.mxu0 0.0
    %158 = vmatmul.mubr.f32.gmra.mrb[0].mxu0 %v78
    %v159 = vpop.f32.mrb[0].mxu0
    %v160 = vadd.f32 0.0, %v159
    %v161 = vpop.f32.mrb[0].mxu0
    %162 = vmatprep.mubr.f32.mxu0 0.0
    %163 = vmatmul.mubr.f32.gmra.mrb[0].mxu0 %v81
    %v164 = vpop.f32.mrb[0].mxu0
    %v165 = vadd.f32 0.0, %v164
    %v166 = vpop.f32.mrb[0].mxu0
    %167 = vdwg.mxu0
    %v168 = vld [vmem:[#allocation2] sm:$0xff]
    %v169 = vld [vmem:[#allocation2 + $0x8] sm:$0xff]
    %s170 = scalar_lea.vmem %s1, 64
    %v171 = vld [vmem:[%s170] sm:$0xff]
    %v172 = vld [vmem:[%s170 + $0x8] sm:$0xff]
    %v173 = vld [vmem:[%s170 + $0x10] sm:$0xff]
    %v174 = vld [vmem:[%s170 + $0x18] sm:$0xff]
    %v175 = vld [vmem:[%s170 + $0x20] sm:$0xff]
    %v176 = vld [vmem:[%s170 + $0x28] sm:$0xff]
    %v177 = vld [vmem:[%s170 + $0x30] sm:$0xff]
    %v178 = vld [vmem:[%s170 + $0x38] sm:$0xff]
    %179 = vmatprep.subr.mxu0 0.0
    %180 = vmatpush1.msra.mxu0 %v171
    %181 = vmatprep.subr.mxu0 0.0
    %182 = vmatpush1.msra.mxu0 %v172
    %183 = vmatprep.subr.mxu0 0.0
    %184 = vmatpush1.msra.mxu0 %v173
    %185 = vmatprep.subr.mxu0 0.0
    %186 = vmatpush1.msra.mxu0 %v174
    %187 = vmatprep.subr.mxu0 0.0
    %188 = vmatpush1.msra.mxu0 %v175
    %189 = vmatprep.subr.mxu0 0.0
    %190 = vmatpush1.msra.mxu0 %v176
    %191 = vmatprep.subr.mxu0 0.0
    %192 = vmatpush1.msra.mxu0 %v177
    %193 = vmatprep.subr.mxu0 0.0
    %194 = vmatpush1.msra.mxu0 %v178
    %195 = vmatprep.subr.mxu0 0.0
    %196 = vmatpush1.msra.mxu0 0.0
    %197 = vmatprep.subr.mxu0 0.0
    %198 = vmatpush1.msra.mxu0 0.0
    %199 = vmatprep.subr.mxu0 0.0
    %200 = vmatpush1.msra.mxu0 0.0
    %201 = vmatprep.subr.mxu0 0.0
    %202 = vmatpush1.msra.mxu0 0.0
    %203 = vmatprep.subr.mxu0 0.0
    %204 = vmatpush1.msra.mxu0 0.0
    %205 = vmatprep.subr.mxu0 0.0
    %206 = vmatpush1.msra.mxu0 0.0
    %207 = vmatprep.subr.mxu0 0.0
    %208 = vmatpush1.msra.mxu0 0.0
    %209 = vmatprep.subr.mxu0 0.0
    %210 = vmatpush1.msra.mxu0 0.0
    %211 = vmatprep.subr.mxu0 0.0
    %212 = vmatpush1.msra.mxu0 0.0
    %213 = vmatprep.subr.mxu0 0.0
    %214 = vmatpush1.msra.mxu0 0.0
    %215 = vmatprep.subr.mxu0 0.0
    %216 = vmatpush1.msra.mxu0 0.0
    %217 = vmatprep.subr.mxu0 0.0
    %218 = vmatpush1.msra.mxu0 0.0
    %219 = vmatprep.subr.mxu0 0.0
    %220 = vmatpush1.msra.mxu0 0.0
    %221 = vmatprep.subr.mxu0 0.0
    %222 = vmatpush1.msra.mxu0 0.0
    %223 = vmatprep.subr.mxu0 0.0
    %224 = vmatpush1.msra.mxu0 0.0
    %225 = vmatprep.subr.mxu0 0.0
    %226 = vmatpush1.msra.mxu0 0.0
    %227 = vmatprep.subr.mxu0 0.0
    %228 = vmatpush1.msra.mxu0 0.0
    %229 = vmatprep.subr.mxu0 0.0
    %230 = vmatpush1.msra.mxu0 0.0
    %231 = vmatprep.subr.mxu0 0.0
    %232 = vmatpush1.msra.mxu0 0.0
    %233 = vmatprep.subr.mxu0 0.0
    %234 = vmatpush1.msra.mxu0 0.0
    %235 = vmatprep.subr.mxu0 0.0
    %236 = vmatpush1.msra.mxu0 0.0
    %237 = vmatprep.subr.mxu0 0.0
    %238 = vmatpush1.msra.mxu0 0.0
    %239 = vmatprep.subr.mxu0 0.0
    %240 = vmatpush1.msra.mxu0 0.0
    %241 = vmatprep.subr.mxu0 0.0
    %242 = vmatpush1.msra.mxu0 0.0
    %243 = vmatprep.mubr.f32.mxu0 0.0
    %244 = vmatmul.mubr.f32.gmra.mrb[0].mxu0 %v72
    %v245 = vpop.f32.mrb[0].mxu0
    %v246 = vadd.f32 0.0, %v245
    %v247 = vpop.f32.mrb[0].mxu0
    %248 = vmatprep.mubr.f32.mxu0 0.0
    %249 = vmatmul.mubr.f32.gmra.mrb[0].mxu0 %v75
    %v250 = vpop.f32.mrb[0].mxu0
    %v251 = vadd.f32 0.0, %v250
    %v252 = vpop.f32.mrb[0].mxu0
    %253 = vmatprep.mubr.f32.mxu0 0.0
    %254 = vmatmul.mubr.f32.gmra.mrb[0].mxu0 %v78
    %v255 = vpop.f32.mrb[0].mxu0
    %v256 = vadd.f32 0.0, %v255
    %v257 = vpop.f32.mrb[0].mxu0
    %258 = vmatprep.mubr.f32.mxu0 0.0
    %259 = vmatmul.mubr.f32.gmra.mrb[0].mxu0 %v81
    %v260 = vpop.f32.mrb[0].mxu0
    %v261 = vadd.f32 0.0, %v260
    %v262 = vpop.f32.mrb[0].mxu0
    %263 = vdwg.mxu0
    %s264 = scalar_lea.vmem [#allocation2], 16
    %v265 = vld [vmem:[%s264] sm:$0xff]
    %v266 = vld [vmem:[%s264 + $0x8] sm:$0xff]
    %vm267 = vcmask 261120
    %v269 = vsel %vm267, %v265, 0
    %v272 = vsel %vm267, %v266, 0
    %274 = vmatprep.subr.mxu0 0.0
    %275 = vmatpush1.msra.mxu0 %v246
    %276 = vmatprep.subr.mxu0 0.0
    %277 = vmatpush1.msra.mxu0 %v251
    %278 = vmatprep.subr.mxu0 0.0
    %279 = vmatpush1.msra.mxu0 %v256
    %280 = vmatprep.subr.mxu0 0.0
    %281 = vmatpush1.msra.mxu0 %v261
    %282 = vmatprep.subr.mxu0 0.0
    %283 = vmatpush1.msra.mxu0 0.0
    %284 = vmatprep.subr.mxu0 0.0
    %285 = vmatpush1.msra.mxu0 0.0
    %286 = vmatprep.subr.mxu0 0.0
    %287 = vmatpush1.msra.mxu0 0.0
    %288 = vmatprep.subr.mxu0 0.0
    %289 = vmatpush1.msra.mxu0 0.0
    %290 = vmatprep.subr.mxu0 0.0
    %291 = vmatpush1.msra.mxu0 0.0
    %292 = vmatprep.subr.mxu0 0.0
    %293 = vmatpush1.msra.mxu0 0.0
    %294 = vmatprep.subr.mxu0 0.0
    %295 = vmatpush1.msra.mxu0 0.0
    %296 = vmatprep.subr.mxu0 0.0
    %297 = vmatpush1.msra.mxu0 0.0
    %298 = vmatprep.subr.mxu0 0.0
    %299 = vmatpush1.msra.mxu0 0.0
    %300 = vmatprep.subr.mxu0 0.0
    %301 = vmatpush1.msra.mxu0 0.0
    %302 = vmatprep.subr.mxu0 0.0
    %303 = vmatpush1.msra.mxu0 0.0
    %304 = vmatprep.subr.mxu0 0.0
    %305 = vmatpush1.msra.mxu0 0.0
    %306 = vmatprep.subr.mxu0 0.0
    %307 = vmatpush1.msra.mxu0 0.0
    %308 = vmatprep.subr.mxu0 0.0
    %309 = vmatpush1.msra.mxu0 0.0
    %310 = vmatprep.subr.mxu0 0.0
    %311 = vmatpush1.msra.mxu0 0.0
    %312 = vmatprep.subr.mxu0 0.0
    %313 = vmatpush1.msra.mxu0 0.0
    %314 = vmatprep.subr.mxu0 0.0
    %315 = vmatpush1.msra.mxu0 0.0
    %316 = vmatprep.subr.mxu0 0.0
    %317 = vmatpush1.msra.mxu0 0.0
    %318 = vmatprep.subr.mxu0 0.0
    %319 = vmatpush1.msra.mxu0 0.0
    %320 = vmatprep.subr.mxu0 0.0
    %321 = vmatpush1.msra.mxu0 0.0
    %322 = vmatprep.subr.mxu0 0.0
    %323 = vmatpush1.msra.mxu0 0.0
    %324 = vmatprep.subr.mxu0 0.0
    %325 = vmatpush1.msra.mxu0 0.0
    %326 = vmatprep.subr.mxu0 0.0
    %327 = vmatpush1.msra.mxu0 0.0
    %328 = vmatprep.subr.mxu0 0.0
    %329 = vmatpush1.msra.mxu0 0.0
    %330 = vmatprep.subr.mxu0 0.0
    %331 = vmatpush1.msra.mxu0 0.0
    %332 = vmatprep.subr.mxu0 0.0
    %333 = vmatpush1.msra.mxu0 0.0
    %334 = vmatprep.subr.mxu0 0.0
    %335 = vmatpush1.msra.mxu0 0.0
    %336 = vmatprep.subr.mxu0 0.0
    %337 = vmatpush1.msra.mxu0 0.0
    %338 = vmatprep.mubr.f32.mxu0 0.0
    %339 = vmatmul.mubr.f32.gmra.mrb[0].mxu0 %v269
    %v340 = vpop.f32.mrb[0].mxu0
    %v341 = vadd.f32 0.0, %v340
    %v342 = vpop.f32.mrb[0].mxu0
    %343 = vmatprep.mubr.f32.mxu0 0.0
    %344 = vmatmul.mubr.f32.gmra.mrb[0].mxu0 %v272
    %v345 = vpop.f32.mrb[0].mxu0
    %v346 = vadd.f32 0.0, %v345
    %v347 = vpop.f32.mrb[0].mxu0
    %348 = vdwg.mxu0
    %v350 = vsel %vm267, %v168, 0
    %v353 = vsel %vm267, %v169, 0
    %355 = vmatprep.subr.mxu0 0.0
    %356 = vmatpush1.msra.mxu0 %v150
    %357 = vmatprep.subr.mxu0 0.0
    %358 = vmatpush1.msra.mxu0 %v155
    %359 = vmatprep.subr.mxu0 0.0
    %360 = vmatpush1.msra.mxu0 %v160
    %361 = vmatprep.subr.mxu0 0.0
    %362 = vmatpush1.msra.mxu0 %v165
    %363 = vmatprep.subr.mxu0 0.0
    %364 = vmatpush1.msra.mxu0 0.0
    %365 = vmatprep.subr.mxu0 0.0
    %366 = vmatpush1.msra.mxu0 0.0
    %367 = vmatprep.subr.mxu0 0.0
    %368 = vmatpush1.msra.mxu0 0.0
    %369 = vmatprep.subr.mxu0 0.0
    %370 = vmatpush1.msra.mxu0 0.0
    %371 = vmatprep.subr.mxu0 0.0
    %372 = vmatpush1.msra.mxu0 0.0
    %373 = vmatprep.subr.mxu0 0.0
    %374 = vmatpush1.msra.mxu0 0.0
    %375 = vmatprep.subr.mxu0 0.0
    %376 = vmatpush1.msra.mxu0 0.0
    %377 = vmatprep.subr.mxu0 0.0
    %378 = vmatpush1.msra.mxu0 0.0
    %379 = vmatprep.subr.mxu0 0.0
    %380 = vmatpush1.msra.mxu0 0.0
    %381 = vmatprep.subr.mxu0 0.0
    %382 = vmatpush1.msra.mxu0 0.0
    %383 = vmatprep.subr.mxu0 0.0
    %384 = vmatpush1.msra.mxu0 0.0
    %385 = vmatprep.subr.mxu0 0.0
    %386 = vmatpush1.msra.mxu0 0.0
    %387 = vmatprep.subr.mxu0 0.0
    %388 = vmatpush1.msra.mxu0 0.0
    %389 = vmatprep.subr.mxu0 0.0
    %390 = vmatpush1.msra.mxu0 0.0
    %391 = vmatprep.subr.mxu0 0.0
    %392 = vmatpush1.msra.mxu0 0.0
    %393 = vmatprep.subr.mxu0 0.0
    %394 = vmatpush1.msra.mxu0 0.0
    %395 = vmatprep.subr.mxu0 0.0
    %396 = vmatpush1.msra.mxu0 0.0
    %397 = vmatprep.subr.mxu0 0.0
    %398 = vmatpush1.msra.mxu0 0.0
    %399 = vmatprep.subr.mxu0 0.0
    %400 = vmatpush1.msra.mxu0 0.0
    %401 = vmatprep.subr.mxu0 0.0
    %402 = vmatpush1.msra.mxu0 0.0
    %403 = vmatprep.subr.mxu0 0.0
    %404 = vmatpush1.msra.mxu0 0.0
    %405 = vmatprep.subr.mxu0 0.0
    %406 = vmatpush1.msra.mxu0 0.0
    %407 = vmatprep.subr.mxu0 0.0
    %408 = vmatpush1.msra.mxu0 0.0
    %409 = vmatprep.subr.mxu0 0.0
    %410 = vmatpush1.msra.mxu0 0.0
    %411 = vmatprep.subr.mxu0 0.0
    %412 = vmatpush1.msra.mxu0 0.0
    %413 = vmatprep.subr.mxu0 0.0
    %414 = vmatpush1.msra.mxu0 0.0
    %415 = vmatprep.subr.mxu0 0.0
    %416 = vmatpush1.msra.mxu0 0.0
    %417 = vmatprep.subr.mxu0 0.0
    %418 = vmatpush1.msra.mxu0 0.0
    %419 = vmatprep.mubr.f32.mxu0 0.0
    %420 = vmatmul.mubr.f32.gmra.mrb[0].mxu0 %v350
    %v421 = vpop.f32.mrb[0].mxu0
    %v422 = vadd.f32 %v341, %v421
    %v423 = vpop.f32.mrb[0].mxu0
    %424 = vmatprep.mubr.f32.mxu0 0.0
    %425 = vmatmul.mubr.f32.gmra.mrb[0].mxu0 %v353
    %v426 = vpop.f32.mrb[0].mxu0
    %v427 = vadd.f32 %v346, %v426
    %v428 = vpop.f32.mrb[0].mxu0
    %429 = vdwg.mxu0
    %s430 = scalar_lea.vmem %s1, 128
    %v431 = vld [vmem:[%s430] sm:$0xff]
    %v432 = vld [vmem:[%s430 + $0x8] sm:$0xff]
    %v433 = vld [vmem:[%s430 + $0x10] sm:$0xff]
    %v434 = vld [vmem:[%s430 + $0x18] sm:$0xff]
    %v435 = vld [vmem:[%s430 + $0x20] sm:$0xff]
    %v436 = vld [vmem:[%s430 + $0x28] sm:$0xff]
    %v437 = vld [vmem:[%s430 + $0x30] sm:$0xff]
    %v438 = vld [vmem:[%s430 + $0x38] sm:$0xff]
    %439 = vmatprep.subr.mxu0 0.0
    %440 = vmatpush1.msra.mxu0 %v431
    %441 = vmatprep.subr.mxu0 0.0
    %442 = vmatpush1.msra.mxu0 %v432
    %443 = vmatprep.subr.mxu0 0.0
    %444 = vmatpush1.msra.mxu0 %v433
    %445 = vmatprep.subr.mxu0 0.0
    %446 = vmatpush1.msra.mxu0 %v434
    %447 = vmatprep.subr.mxu0 0.0
    %448 = vmatpush1.msra.mxu0 %v435
    %449 = vmatprep.subr.mxu0 0.0
    %450 = vmatpush1.msra.mxu0 %v436
    %451 = vmatprep.subr.mxu0 0.0
    %452 = vmatpush1.msra.mxu0 %v437
    %453 = vmatprep.subr.mxu0 0.0
    %454 = vmatpush1.msra.mxu0 %v438
    %455 = vmatprep.subr.mxu0 0.0
    %456 = vmatpush1.msra.mxu0 0.0
    %457 = vmatprep.subr.mxu0 0.0
    %458 = vmatpush1.msra.mxu0 0.0
    %459 = vmatprep.subr.mxu0 0.0
    %460 = vmatpush1.msra.mxu0 0.0
    %461 = vmatprep.subr.mxu0 0.0
    %462 = vmatpush1.msra.mxu0 0.0
    %463 = vmatprep.subr.mxu0 0.0
    %464 = vmatpush1.msra.mxu0 0.0
    %465 = vmatprep.subr.mxu0 0.0
    %466 = vmatpush1.msra.mxu0 0.0
    %467 = vmatprep.subr.mxu0 0.0
    %468 = vmatpush1.msra.mxu0 0.0
    %469 = vmatprep.subr.mxu0 0.0
    %470 = vmatpush1.msra.mxu0 0.0
    %471 = vmatprep.subr.mxu0 0.0
    %472 = vmatpush1.msra.mxu0 0.0
    %473 = vmatprep.subr.mxu0 0.0
    %474 = vmatpush1.msra.mxu0 0.0
    %475 = vmatprep.subr.mxu0 0.0
    %476 = vmatpush1.msra.mxu0 0.0
    %477 = vmatprep.subr.mxu0 0.0
    %478 = vmatpush1.msra.mxu0 0.0
    %479 = vmatprep.subr.mxu0 0.0
    %480 = vmatpush1.msra.mxu0 0.0
    %481 = vmatprep.subr.mxu0 0.0
    %482 = vmatpush1.msra.mxu0 0.0
    %483 = vmatprep.subr.mxu0 0.0
    %484 = vmatpush1.msra.mxu0 0.0
    %485 = vmatprep.subr.mxu0 0.0
    %486 = vmatpush1.msra.mxu0 0.0
    %487 = vmatprep.subr.mxu0 0.0
    %488 = vmatpush1.msra.mxu0 0.0
    %489 = vmatprep.subr.mxu0 0.0
    %490 = vmatpush1.msra.mxu0 0.0
    %491 = vmatprep.subr.mxu0 0.0
    %492 = vmatpush1.msra.mxu0 0.0
    %493 = vmatprep.subr.mxu0 0.0
    %494 = vmatpush1.msra.mxu0 0.0
    %495 = vmatprep.subr.mxu0 0.0
    %496 = vmatpush1.msra.mxu0 0.0
    %497 = vmatprep.subr.mxu0 0.0
    %498 = vmatpush1.msra.mxu0 0.0
    %499 = vmatprep.subr.mxu0 0.0
    %500 = vmatpush1.msra.mxu0 0.0
    %501 = vmatprep.subr.mxu0 0.0
    %502 = vmatpush1.msra.mxu0 0.0
    %503 = vmatprep.mubr.f32.mxu0 0.0
    %504 = vmatmul.mubr.f32.gmra.mrb[0].mxu0 %v72
    %v505 = vpop.f32.mrb[0].mxu0
    %v506 = vadd.f32 0.0, %v505
    %v507 = vpop.f32.mrb[0].mxu0
    %508 = vmatprep.mubr.f32.mxu0 0.0
    %509 = vmatmul.mubr.f32.gmra.mrb[0].mxu0 %v75
    %v510 = vpop.f32.mrb[0].mxu0
    %v511 = vadd.f32 0.0, %v510
    %v512 = vpop.f32.mrb[0].mxu0
    %513 = vmatprep.mubr.f32.mxu0 0.0
    %514 = vmatmul.mubr.f32.gmra.mrb[0].mxu0 %v78
    %v515 = vpop.f32.mrb[0].mxu0
    %v516 = vadd.f32 0.0, %v515
    %v517 = vpop.f32.mrb[0].mxu0
    %518 = vmatprep.mubr.f32.mxu0 0.0
    %519 = vmatmul.mubr.f32.gmra.mrb[0].mxu0 %v81
    %v520 = vpop.f32.mrb[0].mxu0
    %v521 = vadd.f32 0.0, %v520
    %v522 = vpop.f32.mrb[0].mxu0
    %523 = vdwg.mxu0
    %s524 = scalar_lea.vmem [#allocation2], 32
    %v525 = vld [vmem:[%s524] sm:$0xff]
    %v526 = vld [vmem:[%s524 + $0x8] sm:$0xff]
    %v528 = vsel %vm267, %v525, 0
    %v531 = vsel %vm267, %v526, 0
    %533 = vmatprep.subr.mxu0 0.0
    %534 = vmatpush1.msra.mxu0 %v506
    %535 = vmatprep.subr.mxu0 0.0
    %536 = vmatpush1.msra.mxu0 %v511
    %537 = vmatprep.subr.mxu0 0.0
    %538 = vmatpush1.msra.mxu0 %v516
    %539 = vmatprep.subr.mxu0 0.0
    %540 = vmatpush1.msra.mxu0 %v521
    %541 = vmatprep.subr.mxu0 0.0
    %542 = vmatpush1.msra.mxu0 0.0
    %543 = vmatprep.subr.mxu0 0.0
    %544 = vmatpush1.msra.mxu0 0.0
    %545 = vmatprep.subr.mxu0 0.0
    %546 = vmatpush1.msra.mxu0 0.0
    %547 = vmatprep.subr.mxu0 0.0
    %548 = vmatpush1.msra.mxu0 0.0
    %549 = vmatprep.subr.mxu0 0.0
    %550 = vmatpush1.msra.mxu0 0.0
    %551 = vmatprep.subr.mxu0 0.0
    %552 = vmatpush1.msra.mxu0 0.0
    %553 = vmatprep.subr.mxu0 0.0
    %554 = vmatpush1.msra.mxu0 0.0
    %555 = vmatprep.subr.mxu0 0.0
    %556 = vmatpush1.msra.mxu0 0.0
    %557 = vmatprep.subr.mxu0 0.0
    %558 = vmatpush1.msra.mxu0 0.0
    %559 = vmatprep.subr.mxu0 0.0
    %560 = vmatpush1.msra.mxu0 0.0
    %561 = vmatprep.subr.mxu0 0.0
    %562 = vmatpush1.msra.mxu0 0.0
    %563 = vmatprep.subr.mxu0 0.0
    %564 = vmatpush1.msra.mxu0 0.0
    %565 = vmatprep.subr.mxu0 0.0
    %566 = vmatpush1.msra.mxu0 0.0
    %567 = vmatprep.subr.mxu0 0.0
    %568 = vmatpush1.msra.mxu0 0.0
    %569 = vmatprep.subr.mxu0 0.0
    %570 = vmatpush1.msra.mxu0 0.0
    %571 = vmatprep.subr.mxu0 0.0
    %572 = vmatpush1.msra.mxu0 0.0
    %573 = vmatprep.subr.mxu0 0.0
    %574 = vmatpush1.msra.mxu0 0.0
    %575 = vmatprep.subr.mxu0 0.0
    %576 = vmatpush1.msra.mxu0 0.0
    %577 = vmatprep.subr.mxu0 0.0
    %578 = vmatpush1.msra.mxu0 0.0
    %579 = vmatprep.subr.mxu0 0.0
    %580 = vmatpush1.msra.mxu0 0.0
    %581 = vmatprep.subr.mxu0 0.0
    %582 = vmatpush1.msra.mxu0 0.0
    %583 = vmatprep.subr.mxu0 0.0
    %584 = vmatpush1.msra.mxu0 0.0
    %585 = vmatprep.subr.mxu0 0.0
    %586 = vmatpush1.msra.mxu0 0.0
    %587 = vmatprep.subr.mxu0 0.0
    %588 = vmatpush1.msra.mxu0 0.0
    %589 = vmatprep.subr.mxu0 0.0
    %590 = vmatpush1.msra.mxu0 0.0
    %591 = vmatprep.subr.mxu0 0.0
    %592 = vmatpush1.msra.mxu0 0.0
    %593 = vmatprep.subr.mxu0 0.0
    %594 = vmatpush1.msra.mxu0 0.0
    %595 = vmatprep.subr.mxu0 0.0
    %596 = vmatpush1.msra.mxu0 0.0
    %597 = vmatprep.mubr.f32.mxu0 0.0
    %598 = vmatmul.mubr.f32.gmra.mrb[0].mxu0 %v528
    %v599 = vpop.f32.mrb[0].mxu0
    %v600 = vadd.f32 0.0, %v599
    %v601 = vpop.f32.mrb[0].mxu0
    %602 = vmatprep.mubr.f32.mxu0 0.0
    %603 = vmatmul.mubr.f32.gmra.mrb[0].mxu0 %v531
    %v604 = vpop.f32.mrb[0].mxu0
    %v605 = vadd.f32 0.0, %v604
    %v606 = vpop.f32.mrb[0].mxu0
    %607 = vdwg.mxu0
    %v608 = vadd.f32 %v422, %v600
    %v609 = vadd.f32 %v427, %v605
    %s610 = scalar_lea.vmem %s1, 192
    %v611 = vld [vmem:[%s610] sm:$0xff]
    %v612 = vld [vmem:[%s610 + $0x8] sm:$0xff]
    %v613 = vld [vmem:[%s610 + $0x10] sm:$0xff]
    %v614 = vld [vmem:[%s610 + $0x18] sm:$0xff]
    %v615 = vld [vmem:[%s610 + $0x20] sm:$0xff]
    %v616 = vld [vmem:[%s610 + $0x28] sm:$0xff]
    %v617 = vld [vmem:[%s610 + $0x30] sm:$0xff]
    %v618 = vld [vmem:[%s610 + $0x38] sm:$0xff]
    %619 = vmatprep.subr.mxu0 0.0
    %620 = vmatpush1.msra.mxu0 %v611
    %621 = vmatprep.subr.mxu0 0.0
    %622 = vmatpush1.msra.mxu0 %v612
    %623 = vmatprep.subr.mxu0 0.0
    %624 = vmatpush1.msra.mxu0 %v613
    %625 = vmatprep.subr.mxu0 0.0
    %626 = vmatpush1.msra.mxu0 %v614
    %627 = vmatprep.subr.mxu0 0.0
    %628 = vmatpush1.msra.mxu0 %v615
    %629 = vmatprep.subr.mxu0 0.0
    %630 = vmatpush1.msra.mxu0 %v616
    %631 = vmatprep.subr.mxu0 0.0
    %632 = vmatpush1.msra.mxu0 %v617
    %633 = vmatprep.subr.mxu0 0.0
    %634 = vmatpush1.msra.mxu0 %v618
    %635 = vmatprep.subr.mxu0 0.0
    %636 = vmatpush1.msra.mxu0 0.0
    %637 = vmatprep.subr.mxu0 0.0
    %638 = vmatpush1.msra.mxu0 0.0
    %639 = vmatprep.subr.mxu0 0.0
    %640 = vmatpush1.msra.mxu0 0.0
    %641 = vmatprep.subr.mxu0 0.0
    %642 = vmatpush1.msra.mxu0 0.0
    %643 = vmatprep.subr.mxu0 0.0
    %644 = vmatpush1.msra.mxu0 0.0
    %645 = vmatprep.subr.mxu0 0.0
    %646 = vmatpush1.msra.mxu0 0.0
    %647 = vmatprep.subr.mxu0 0.0
    %648 = vmatpush1.msra.mxu0 0.0
    %649 = vmatprep.subr.mxu0 0.0
    %650 = vmatpush1.msra.mxu0 0.0
    %651 = vmatprep.subr.mxu0 0.0
    %652 = vmatpush1.msra.mxu0 0.0
    %653 = vmatprep.subr.mxu0 0.0
    %654 = vmatpush1.msra.mxu0 0.0
    %655 = vmatprep.subr.mxu0 0.0
    %656 = vmatpush1.msra.mxu0 0.0
    %657 = vmatprep.subr.mxu0 0.0
    %658 = vmatpush1.msra.mxu0 0.0
    %659 = vmatprep.subr.mxu0 0.0
    %660 = vmatpush1.msra.mxu0 0.0
    %661 = vmatprep.subr.mxu0 0.0
    %662 = vmatpush1.msra.mxu0 0.0
    %663 = vmatprep.subr.mxu0 0.0
    %664 = vmatpush1.msra.mxu0 0.0
    %665 = vmatprep.subr.mxu0 0.0
    %666 = vmatpush1.msra.mxu0 0.0
    %667 = vmatprep.subr.mxu0 0.0
    %668 = vmatpush1.msra.mxu0 0.0
    %669 = vmatprep.subr.mxu0 0.0
    %670 = vmatpush1.msra.mxu0 0.0
    %671 = vmatprep.subr.mxu0 0.0
    %672 = vmatpush1.msra.mxu0 0.0
    %673 = vmatprep.subr.mxu0 0.0
    %674 = vmatpush1.msra.mxu0 0.0
    %675 = vmatprep.subr.mxu0 0.0
    %676 = vmatpush1.msra.mxu0 0.0
    %677 = vmatprep.subr.mxu0 0.0
    %678 = vmatpush1.msra.mxu0 0.0
    %679 = vmatprep.subr.mxu0 0.0
    %680 = vmatpush1.msra.mxu0 0.0
    %681 = vmatprep.subr.mxu0 0.0
    %682 = vmatpush1.msra.mxu0 0.0
    %683 = vmatprep.mubr.f32.mxu0 0.0
    %684 = vmatmul.mubr.f32.gmra.mrb[0].mxu0 %v72
    %v685 = vpop.f32.mrb[0].mxu0
    %v686 = vadd.f32 0.0, %v685
    %v687 = vpop.f32.mrb[0].mxu0
    %688 = vmatprep.mubr.f32.mxu0 0.0
    %689 = vmatmul.mubr.f32.gmra.mrb[0].mxu0 %v75
    %v690 = vpop.f32.mrb[0].mxu0
    %v691 = vadd.f32 0.0, %v690
    %v692 = vpop.f32.mrb[0].mxu0
    %693 = vmatprep.mubr.f32.mxu0 0.0
    %694 = vmatmul.mubr.f32.gmra.mrb[0].mxu0 %v78
    %v695 = vpop.f32.mrb[0].mxu0
    %v696 = vadd.f32 0.0, %v695
    %v697 = vpop.f32.mrb[0].mxu0
    %698 = vmatprep.mubr.f32.mxu0 0.0
    %699 = vmatmul.mubr.f32.gmra.mrb[0].mxu0 %v81
    %v700 = vpop.f32.mrb[0].mxu0
    %v701 = vadd.f32 0.0, %v700
    %v702 = vpop.f32.mrb[0].mxu0
    %703 = vdwg.mxu0
    %s704 = scalar_lea.vmem [#allocation2], 48
    %v705 = vld [vmem:[%s704] sm:$0xff]
    %v706 = vld [vmem:[%s704 + $0x8] sm:$0xff]
    %v708 = vsel %vm267, %v705, 0
    %v711 = vsel %vm267, %v706, 0
    %713 = vmatprep.subr.mxu0 0.0
    %714 = vmatpush1.msra.mxu0 %v686
    %715 = vmatprep.subr.mxu0 0.0
    %716 = vmatpush1.msra.mxu0 %v691
    %717 = vmatprep.subr.mxu0 0.0
    %718 = vmatpush1.msra.mxu0 %v696
    %719 = vmatprep.subr.mxu0 0.0
    %720 = vmatpush1.msra.mxu0 %v701
    %721 = vmatprep.subr.mxu0 0.0
    %722 = vmatpush1.msra.mxu0 0.0
    %723 = vmatprep.subr.mxu0 0.0
    %724 = vmatpush1.msra.mxu0 0.0
    %725 = vmatprep.subr.mxu0 0.0
    %726 = vmatpush1.msra.mxu0 0.0
    %727 = vmatprep.subr.mxu0 0.0
    %728 = vmatpush1.msra.mxu0 0.0
    %729 = vmatprep.subr.mxu0 0.0
    %730 = vmatpush1.msra.mxu0 0.0
    %731 = vmatprep.subr.mxu0 0.0
    %732 = vmatpush1.msra.mxu0 0.0
    %733 = vmatprep.subr.mxu0 0.0
    %734 = vmatpush1.msra.mxu0 0.0
    %735 = vmatprep.subr.mxu0 0.0
    %736 = vmatpush1.msra.mxu0 0.0
    %737 = vmatprep.subr.mxu0 0.0
    %738 = vmatpush1.msra.mxu0 0.0
    %739 = vmatprep.subr.mxu0 0.0
    %740 = vmatpush1.msra.mxu0 0.0
    %741 = vmatprep.subr.mxu0 0.0
    %742 = vmatpush1.msra.mxu0 0.0
    %743 = vmatprep.subr.mxu0 0.0
    %744 = vmatpush1.msra.mxu0 0.0
    %745 = vmatprep.subr.mxu0 0.0
    %746 = vmatpush1.msra.mxu0 0.0
    %747 = vmatprep.subr.mxu0 0.0
    %748 = vmatpush1.msra.mxu0 0.0
    %749 = vmatprep.subr.mxu0 0.0
    %750 = vmatpush1.msra.mxu0 0.0
    %751 = vmatprep.subr.mxu0 0.0
    %752 = vmatpush1.msra.mxu0 0.0
    %753 = vmatprep.subr.mxu0 0.0
    %754 = vmatpush1.msra.mxu0 0.0
    %755 = vmatprep.subr.mxu0 0.0
    %756 = vmatpush1.msra.mxu0 0.0
    %757 = vmatprep.subr.mxu0 0.0
    %758 = vmatpush1.msra.mxu0 0.0
    %759 = vmatprep.subr.mxu0 0.0
    %760 = vmatpush1.msra.mxu0 0.0
    %761 = vmatprep.subr.mxu0 0.0
    %762 = vmatpush1.msra.mxu0 0.0
    %763 = vmatprep.subr.mxu0 0.0
    %764 = vmatpush1.msra.mxu0 0.0
    %765 = vmatprep.subr.mxu0 0.0
    %766 = vmatpush1.msra.mxu0 0.0
    %767 = vmatprep.subr.mxu0 0.0
    %768 = vmatpush1.msra.mxu0 0.0
    %769 = vmatprep.subr.mxu0 0.0
    %770 = vmatpush1.msra.mxu0 0.0
    %771 = vmatprep.subr.mxu0 0.0
    %772 = vmatpush1.msra.mxu0 0.0
    %773 = vmatprep.subr.mxu0 0.0
    %774 = vmatpush1.msra.mxu0 0.0
    %775 = vmatprep.subr.mxu0 0.0
    %776 = vmatpush1.msra.mxu0 0.0
    %777 = vmatprep.mubr.f32.mxu0 0.0
    %778 = vmatmul.mubr.f32.gmra.mrb[0].mxu0 %v708
    %v779 = vpop.f32.mrb[0].mxu0
    %v780 = vadd.f32 0.0, %v779
    %v781 = vpop.f32.mrb[0].mxu0
    %782 = vmatprep.mubr.f32.mxu0 0.0
    %783 = vmatmul.mubr.f32.gmra.mrb[0].mxu0 %v711
    %v784 = vpop.f32.mrb[0].mxu0
    %v785 = vadd.f32 0.0, %v784
    %v786 = vpop.f32.mrb[0].mxu0
    %787 = vdwg.mxu0
    %v788 = vadd.f32 %v608, %v780
    %v789 = vadd.f32 %v609, %v785
    %v790 = vmax.f32 %v788, 0.0
    %v791 = vmax.f32 %v789, 0.0
    %v792 = vld [vmem:[%s3] sm:$0xff]
    %v793 = vld [vmem:[%s3 + $0x8] sm:$0xff]
    %v794 = vld [vmem:[%s3 + $0x10] sm:$0xff]
    %v795 = vld [vmem:[%s3 + $0x18] sm:$0xff]
    %v796 = vld [vmem:[%s3 + $0x20] sm:$0xff]
    %v797 = vld [vmem:[%s3 + $0x28] sm:$0xff]
    %v798 = vld [vmem:[%s3 + $0x30] sm:$0xff]
    %v799 = vld [vmem:[%s3 + $0x38] sm:$0xff]
    %v801 = vsel %vm70, %v790, 0
    %v804 = vsel %vm70, %v791, 0
    %806 = vmatprep.subr.mxu0 0.0
    %807 = vmatpush1.msra.mxu0 %v792
    %808 = vmatprep.subr.mxu0 0.0
    %809 = vmatpush1.msra.mxu0 %v793
    %810 = vmatprep.subr.mxu0 0.0
    %811 = vmatpush1.msra.mxu0 %v794
    %812 = vmatprep.subr.mxu0 0.0
    %813 = vmatpush1.msra.mxu0 %v795
    %814 = vmatprep.subr.mxu0 0.0
    %815 = vmatpush1.msra.mxu0 %v796
    %816 = vmatprep.subr.mxu0 0.0
    %817 = vmatpush1.msra.mxu0 %v797
    %818 = vmatprep.subr.mxu0 0.0
    %819 = vmatpush1.msra.mxu0 %v798
    %820 = vmatprep.subr.mxu0 0.0
    %821 = vmatpush1.msra.mxu0 %v799
    %822 = vmatprep.subr.mxu0 0.0
    %823 = vmatpush1.msra.mxu0 0.0
    %824 = vmatprep.subr.mxu0 0.0
    %825 = vmatpush1.msra.mxu0 0.0
    %826 = vmatprep.subr.mxu0 0.0
    %827 = vmatpush1.msra.mxu0 0.0
    %828 = vmatprep.subr.mxu0 0.0
    %829 = vmatpush1.msra.mxu0 0.0
    %830 = vmatprep.subr.mxu0 0.0
    %831 = vmatpush1.msra.mxu0 0.0
    %832 = vmatprep.subr.mxu0 0.0
    %833 = vmatpush1.msra.mxu0 0.0
    %834 = vmatprep.subr.mxu0 0.0
    %835 = vmatpush1.msra.mxu0 0.0
    %836 = vmatprep.subr.mxu0 0.0
    %837 = vmatpush1.msra.mxu0 0.0
    %838 = vmatprep.subr.mxu0 0.0
    %839 = vmatpush1.msra.mxu0 0.0
    %840 = vmatprep.subr.mxu0 0.0
    %841 = vmatpush1.msra.mxu0 0.0
    %842 = vmatprep.subr.mxu0 0.0
    %843 = vmatpush1.msra.mxu0 0.0
    %844 = vmatprep.subr.mxu0 0.0
    %845 = vmatpush1.msra.mxu0 0.0
    %846 = vmatprep.subr.mxu0 0.0
    %847 = vmatpush1.msra.mxu0 0.0
    %848 = vmatprep.subr.mxu0 0.0
    %849 = vmatpush1.msra.mxu0 0.0
    %850 = vmatprep.subr.mxu0 0.0
    %851 = vmatpush1.msra.mxu0 0.0
    %852 = vmatprep.subr.mxu0 0.0
    %853 = vmatpush1.msra.mxu0 0.0
    %854 = vmatprep.subr.mxu0 0.0
    %855 = vmatpush1.msra.mxu0 0.0
    %856 = vmatprep.subr.mxu0 0.0
    %857 = vmatpush1.msra.mxu0 0.0
    %858 = vmatprep.subr.mxu0 0.0
    %859 = vmatpush1.msra.mxu0 0.0
    %860 = vmatprep.subr.mxu0 0.0
    %861 = vmatpush1.msra.mxu0 0.0
    %862 = vmatprep.subr.mxu0 0.0
    %863 = vmatpush1.msra.mxu0 0.0
    %864 = vmatprep.subr.mxu0 0.0
    %865 = vmatpush1.msra.mxu0 0.0
    %866 = vmatprep.subr.mxu0 0.0
    %867 = vmatpush1.msra.mxu0 0.0
    %868 = vmatprep.subr.mxu0 0.0
    %869 = vmatpush1.msra.mxu0 0.0
    %870 = vmatprep.mubr.f32.mxu0 0.0
    %871 = vmatmul.mubr.f32.gmra.mrb[0].mxu0 %v801
    %v872 = vpop.f32.mrb[0].mxu0
    %v873 = vadd.f32 0.0, %v872
    %v874 = vpop.f32.mrb[0].mxu0
    %875 = vmatprep.mubr.f32.mxu0 0.0
    %876 = vmatmul.mubr.f32.gmra.mrb[0].mxu0 %v804
    %v877 = vpop.f32.mrb[0].mxu0
    %v878 = vadd.f32 0.0, %v877
    %v879 = vpop.f32.mrb[0].mxu0
    %880 = vdwg.mxu0
    %v881 = vld [vmem:[%s4] sm:$0xff]
    %v882 = vld [vmem:[%s4 + $0x8] sm:$0xff]
    %v883 = vld [vmem:[%s4 + $0x10] sm:$0xff]
    %v884 = vld [vmem:[%s4 + $0x18] sm:$0xff]
    %s885 = scalar_lea.vmem %s3, 64
    %v886 = vld [vmem:[%s885] sm:$0xff]
    %v887 = vld [vmem:[%s885 + $0x8] sm:$0xff]
    %v888 = vld [vmem:[%s885 + $0x10] sm:$0xff]
    %v889 = vld [vmem:[%s885 + $0x18] sm:$0xff]
    %v890 = vld [vmem:[%s885 + $0x20] sm:$0xff]
    %v891 = vld [vmem:[%s885 + $0x28] sm:$0xff]
    %v892 = vld [vmem:[%s885 + $0x30] sm:$0xff]
    %v893 = vld [vmem:[%s885 + $0x38] sm:$0xff]
    %894 = vmatprep.subr.mxu0 0.0
    %895 = vmatpush1.msra.mxu0 %v886
    %896 = vmatprep.subr.mxu0 0.0
    %897 = vmatpush1.msra.mxu0 %v887
    %898 = vmatprep.subr.mxu0 0.0
    %899 = vmatpush1.msra.mxu0 %v888
    %900 = vmatprep.subr.mxu0 0.0
    %901 = vmatpush1.msra.mxu0 %v889
    %902 = vmatprep.subr.mxu0 0.0
    %903 = vmatpush1.msra.mxu0 %v890
    %904 = vmatprep.subr.mxu0 0.0
    %905 = vmatpush1.msra.mxu0 %v891
    %906 = vmatprep.subr.mxu0 0.0
    %907 = vmatpush1.msra.mxu0 %v892
    %908 = vmatprep.subr.mxu0 0.0
    %909 = vmatpush1.msra.mxu0 %v893
    %910 = vmatprep.subr.mxu0 0.0
    %911 = vmatpush1.msra.mxu0 0.0
    %912 = vmatprep.subr.mxu0 0.0
    %913 = vmatpush1.msra.mxu0 0.0
    %914 = vmatprep.subr.mxu0 0.0
    %915 = vmatpush1.msra.mxu0 0.0
    %916 = vmatprep.subr.mxu0 0.0
    %917 = vmatpush1.msra.mxu0 0.0
    %918 = vmatprep.subr.mxu0 0.0
    %919 = vmatpush1.msra.mxu0 0.0
    %920 = vmatprep.subr.mxu0 0.0
    %921 = vmatpush1.msra.mxu0 0.0
    %922 = vmatprep.subr.mxu0 0.0
    %923 = vmatpush1.msra.mxu0 0.0
    %924 = vmatprep.subr.mxu0 0.0
    %925 = vmatpush1.msra.mxu0 0.0
    %926 = vmatprep.subr.mxu0 0.0
    %927 = vmatpush1.msra.mxu0 0.0
    %928 = vmatprep.subr.mxu0 0.0
    %929 = vmatpush1.msra.mxu0 0.0
    %930 = vmatprep.subr.mxu0 0.0
    %931 = vmatpush1.msra.mxu0 0.0
    %932 = vmatprep.subr.mxu0 0.0
    %933 = vmatpush1.msra.mxu0 0.0
    %934 = vmatprep.subr.mxu0 0.0
    %935 = vmatpush1.msra.mxu0 0.0
    %936 = vmatprep.subr.mxu0 0.0
    %937 = vmatpush1.msra.mxu0 0.0
    %938 = vmatprep.subr.mxu0 0.0
    %939 = vmatpush1.msra.mxu0 0.0
    %940 = vmatprep.subr.mxu0 0.0
    %941 = vmatpush1.msra.mxu0 0.0
    %942 = vmatprep.subr.mxu0 0.0
    %943 = vmatpush1.msra.mxu0 0.0
    %944 = vmatprep.subr.mxu0 0.0
    %945 = vmatpush1.msra.mxu0 0.0
    %946 = vmatprep.subr.mxu0 0.0
    %947 = vmatpush1.msra.mxu0 0.0
    %948 = vmatprep.subr.mxu0 0.0
    %949 = vmatpush1.msra.mxu0 0.0
    %950 = vmatprep.subr.mxu0 0.0
    %951 = vmatpush1.msra.mxu0 0.0
    %952 = vmatprep.subr.mxu0 0.0
    %953 = vmatpush1.msra.mxu0 0.0
    %954 = vmatprep.subr.mxu0 0.0
    %955 = vmatpush1.msra.mxu0 0.0
    %956 = vmatprep.subr.mxu0 0.0
    %957 = vmatpush1.msra.mxu0 0.0
    %958 = vmatprep.mubr.f32.mxu0 0.0
    %959 = vmatmul.mubr.f32.gmra.mrb[0].mxu0 %v801
    %v960 = vpop.f32.mrb[0].mxu0
    %v961 = vadd.f32 0.0, %v960
    %v962 = vpop.f32.mrb[0].mxu0
    %963 = vmatprep.mubr.f32.mxu0 0.0
    %964 = vmatmul.mubr.f32.gmra.mrb[0].mxu0 %v804
    %v965 = vpop.f32.mrb[0].mxu0
    %v966 = vadd.f32 0.0, %v965
    %v967 = vpop.f32.mrb[0].mxu0
    %968 = vdwg.mxu0
    %s969 = scalar_lea.vmem %s4, 32
    %v970 = vld [vmem:[%s969] sm:$0xff]
    %v971 = vld [vmem:[%s969 + $0x8] sm:$0xff]
    %v972 = vld [vmem:[%s969 + $0x10] sm:$0xff]
    %v973 = vld [vmem:[%s969 + $0x18] sm:$0xff]
    %vm974 = vcmask 130048
    %v976 = vsel %vm974, %v970, 0
    %v979 = vsel %vm974, %v971, 0
    %v982 = vsel %vm974, %v972, 0
    %v985 = vsel %vm974, %v973, 0
    %987 = vmatprep.subr.mxu0 0.0
    %988 = vmatpush1.msra.mxu0 %v961
    %989 = vmatprep.subr.mxu0 0.0
    %990 = vmatpush1.msra.mxu0 %v966
    %991 = vmatprep.subr.mxu0 0.0
    %992 = vmatpush1.msra.mxu0 0.0
    %993 = vmatprep.subr.mxu0 0.0
    %994 = vmatpush1.msra.mxu0 0.0
    %995 = vmatprep.subr.mxu0 0.0
    %996 = vmatpush1.msra.mxu0 0.0
    %997 = vmatprep.subr.mxu0 0.0
    %998 = vmatpush1.msra.mxu0 0.0
    %999 = vmatprep.subr.mxu0 0.0
    %1000 = vmatpush1.msra.mxu0 0.0
    %1001 = vmatprep.subr.mxu0 0.0
    %1002 = vmatpush1.msra.mxu0 0.0
    %1003 = vmatprep.subr.mxu0 0.0
    %1004 = vmatpush1.msra.mxu0 0.0
    %1005 = vmatprep.subr.mxu0 0.0
    %1006 = vmatpush1.msra.mxu0 0.0
    %1007 = vmatprep.subr.mxu0 0.0
    %1008 = vmatpush1.msra.mxu0 0.0
    %1009 = vmatprep.subr.mxu0 0.0
    %1010 = vmatpush1.msra.mxu0 0.0
    %1011 = vmatprep.subr.mxu0 0.0
    %1012 = vmatpush1.msra.mxu0 0.0
    %1013 = vmatprep.subr.mxu0 0.0
    %1014 = vmatpush1.msra.mxu0 0.0
    %1015 = vmatprep.subr.mxu0 0.0
    %1016 = vmatpush1.msra.mxu0 0.0
    %1017 = vmatprep.subr.mxu0 0.0
    %1018 = vmatpush1.msra.mxu0 0.0
    %1019 = vmatprep.subr.mxu0 0.0
    %1020 = vmatpush1.msra.mxu0 0.0
    %1021 = vmatprep.subr.mxu0 0.0
    %1022 = vmatpush1.msra.mxu0 0.0
    %1023 = vmatprep.subr.mxu0 0.0
    %1024 = vmatpush1.msra.mxu0 0.0
    %1025 = vmatprep.subr.mxu0 0.0
    %1026 = vmatpush1.msra.mxu0 0.0
    %1027 = vmatprep.subr.mxu0 0.0
    %1028 = vmatpush1.msra.mxu0 0.0
    %1029 = vmatprep.subr.mxu0 0.0
    %1030 = vmatpush1.msra.mxu0 0.0
    %1031 = vmatprep.subr.mxu0 0.0
    %1032 = vmatpush1.msra.mxu0 0.0
    %1033 = vmatprep.subr.mxu0 0.0
    %1034 = vmatpush1.msra.mxu0 0.0
    %1035 = vmatprep.subr.mxu0 0.0
    %1036 = vmatpush1.msra.mxu0 0.0
    %1037 = vmatprep.subr.mxu0 0.0
    %1038 = vmatpush1.msra.mxu0 0.0
    %1039 = vmatprep.subr.mxu0 0.0
    %1040 = vmatpush1.msra.mxu0 0.0
    %1041 = vmatprep.subr.mxu0 0.0
    %1042 = vmatpush1.msra.mxu0 0.0
    %1043 = vmatprep.subr.mxu0 0.0
    %1044 = vmatpush1.msra.mxu0 0.0
    %1045 = vmatprep.subr.mxu0 0.0
    %1046 = vmatpush1.msra.mxu0 0.0
    %1047 = vmatprep.subr.mxu0 0.0
    %1048 = vmatpush1.msra.mxu0 0.0
    %1049 = vmatprep.subr.mxu0 0.0
    %1050 = vmatpush1.msra.mxu0 0.0
    %1051 = vmatprep.mubr.f32.mxu0 0.0
    %1052 = vmatmul.mubr.f32.gmra.mrb[0].mxu0 %v976
    %v1053 = vpop.f32.mrb[0].mxu0
    %v1054 = vadd.f32 0.0, %v1053
    %v1055 = vpop.f32.mrb[0].mxu0
    %1056 = vmatprep.mubr.f32.mxu0 0.0
    %1057 = vmatmul.mubr.f32.gmra.mrb[0].mxu0 %v979
    %v1058 = vpop.f32.mrb[0].mxu0
    %v1059 = vadd.f32 0.0, %v1058
    %v1060 = vpop.f32.mrb[0].mxu0
    %1061 = vmatprep.mubr.f32.mxu0 0.0
    %1062 = vmatmul.mubr.f32.gmra.mrb[0].mxu0 %v982
    %v1063 = vpop.f32.mrb[0].mxu0
    %v1064 = vadd.f32 0.0, %v1063
    %v1065 = vpop.f32.mrb[0].mxu0
    %1066 = vmatprep.mubr.f32.mxu0 0.0
    %1067 = vmatmul.mubr.f32.gmra.mrb[0].mxu0 %v985
    %v1068 = vpop.f32.mrb[0].mxu0
    %v1069 = vadd.f32 0.0, %v1068
    %v1070 = vpop.f32.mrb[0].mxu0
    %1071 = vdwg.mxu0
    %v1073 = vsel %vm974, %v881, 0
    %v1076 = vsel %vm974, %v882, 0
    %v1079 = vsel %vm974, %v883, 0
    %v1082 = vsel %vm974, %v884, 0
    %1084 = vmatprep.subr.mxu0 0.0
    %1085 = vmatpush1.msra.mxu0 %v873
    %1086 = vmatprep.subr.mxu0 0.0
    %1087 = vmatpush1.msra.mxu0 %v878
    %1088 = vmatprep.subr.mxu0 0.0
    %1089 = vmatpush1.msra.mxu0 0.0
    %1090 = vmatprep.subr.mxu0 0.0
    %1091 = vmatpush1.msra.mxu0 0.0
    %1092 = vmatprep.subr.mxu0 0.0
    %1093 = vmatpush1.msra.mxu0 0.0
    %1094 = vmatprep.subr.mxu0 0.0
    %1095 = vmatpush1.msra.mxu0 0.0
    %1096 = vmatprep.subr.mxu0 0.0
    %1097 = vmatpush1.msra.mxu0 0.0
    %1098 = vmatprep.subr.mxu0 0.0
    %1099 = vmatpush1.msra.mxu0 0.0
    %1100 = vmatprep.subr.mxu0 0.0
    %1101 = vmatpush1.msra.mxu0 0.0
    %1102 = vmatprep.subr.mxu0 0.0
    %1103 = vmatpush1.msra.mxu0 0.0
    %1104 = vmatprep.subr.mxu0 0.0
    %1105 = vmatpush1.msra.mxu0 0.0
    %1106 = vmatprep.subr.mxu0 0.0
    %1107 = vmatpush1.msra.mxu0 0.0
    %1108 = vmatprep.subr.mxu0 0.0
    %1109 = vmatpush1.msra.mxu0 0.0
    %1110 = vmatprep.subr.mxu0 0.0
    %1111 = vmatpush1.msra.mxu0 0.0
    %1112 = vmatprep.subr.mxu0 0.0
    %1113 = vmatpush1.msra.mxu0 0.0
    %1114 = vmatprep.subr.mxu0 0.0
    %1115 = vmatpush1.msra.mxu0 0.0
    %1116 = vmatprep.subr.mxu0 0.0
    %1117 = vmatpush1.msra.mxu0 0.0
    %1118 = vmatprep.subr.mxu0 0.0
    %1119 = vmatpush1.msra.mxu0 0.0
    %1120 = vmatprep.subr.mxu0 0.0
    %1121 = vmatpush1.msra.mxu0 0.0
    %1122 = vmatprep.subr.mxu0 0.0
    %1123 = vmatpush1.msra.mxu0 0.0
    %1124 = vmatprep.subr.mxu0 0.0
    %1125 = vmatpush1.msra.mxu0 0.0
    %1126 = vmatprep.subr.mxu0 0.0
    %1127 = vmatpush1.msra.mxu0 0.0
    %1128 = vmatprep.subr.mxu0 0.0
    %1129 = vmatpush1.msra.mxu0 0.0
    %1130 = vmatprep.subr.mxu0 0.0
    %1131 = vmatpush1.msra.mxu0 0.0
    %1132 = vmatprep.subr.mxu0 0.0
    %1133 = vmatpush1.msra.mxu0 0.0
    %1134 = vmatprep.subr.mxu0 0.0
    %1135 = vmatpush1.msra.mxu0 0.0
    %1136 = vmatprep.subr.mxu0 0.0
    %1137 = vmatpush1.msra.mxu0 0.0
    %1138 = vmatprep.subr.mxu0 0.0
    %1139 = vmatpush1.msra.mxu0 0.0
    %1140 = vmatprep.subr.mxu0 0.0
    %1141 = vmatpush1.msra.mxu0 0.0
    %1142 = vmatprep.subr.mxu0 0.0
    %1143 = vmatpush1.msra.mxu0 0.0
    %1144 = vmatprep.subr.mxu0 0.0
    %1145 = vmatpush1.msra.mxu0 0.0
    %1146 = vmatprep.subr.mxu0 0.0
    %1147 = vmatpush1.msra.mxu0 0.0
    %1148 = vmatprep.mubr.f32.mxu0 0.0
    %1149 = vmatmul.mubr.f32.gmra.mrb[0].mxu0 %v1073
    %v1150 = vpop.f32.mrb[0].mxu0
    %v1151 = vadd.f32 %v1054, %v1150
    %v1152 = vpop.f32.mrb[0].mxu0
    %1153 = vmatprep.mubr.f32.mxu0 0.0
    %1154 = vmatmul.mubr.f32.gmra.mrb[0].mxu0 %v1076
    %v1155 = vpop.f32.mrb[0].mxu0
    %v1156 = vadd.f32 %v1059, %v1155
    %v1157 = vpop.f32.mrb[0].mxu0
    %1158 = vmatprep.mubr.f32.mxu0 0.0
    %1159 = vmatmul.mubr.f32.gmra.mrb[0].mxu0 %v1079
    %v1160 = vpop.f32.mrb[0].mxu0
    %v1161 = vadd.f32 %v1064, %v1160
    %v1162 = vpop.f32.mrb[0].mxu0
    %1163 = vmatprep.mubr.f32.mxu0 0.0
    %1164 = vmatmul.mubr.f32.gmra.mrb[0].mxu0 %v1082
    %v1165 = vpop.f32.mrb[0].mxu0
    %v1166 = vadd.f32 %v1069, %v1165
    %v1167 = vpop.f32.mrb[0].mxu0
    %1168 = vdwg.mxu0
    %s1169 = scalar_lea.vmem %s3, 128
    %v1170 = vld [vmem:[%s1169] sm:$0xff]
    %v1171 = vld [vmem:[%s1169 + $0x8] sm:$0xff]
    %v1172 = vld [vmem:[%s1169 + $0x10] sm:$0xff]
    %v1173 = vld [vmem:[%s1169 + $0x18] sm:$0xff]
    %v1174 = vld [vmem:[%s1169 + $0x20] sm:$0xff]
    %v1175 = vld [vmem:[%s1169 + $0x28] sm:$0xff]
    %v1176 = vld [vmem:[%s1169 + $0x30] sm:$0xff]
    %v1177 = vld [vmem:[%s1169 + $0x38] sm:$0xff]
    %1178 = vmatprep.subr.mxu0 0.0
    %1179 = vmatpush1.msra.mxu0 %v1170
    %1180 = vmatprep.subr.mxu0 0.0
    %1181 = vmatpush1.msra.mxu0 %v1171
    %1182 = vmatprep.subr.mxu0 0.0
    %1183 = vmatpush1.msra.mxu0 %v1172
    %1184 = vmatprep.subr.mxu0 0.0
    %1185 = vmatpush1.msra.mxu0 %v1173
    %1186 = vmatprep.subr.mxu0 0.0
    %1187 = vmatpush1.msra.mxu0 %v1174
    %1188 = vmatprep.subr.mxu0 0.0
    %1189 = vmatpush1.msra.mxu0 %v1175
    %1190 = vmatprep.subr.mxu0 0.0
    %1191 = vmatpush1.msra.mxu0 %v1176
    %1192 = vmatprep.subr.mxu0 0.0
    %1193 = vmatpush1.msra.mxu0 %v1177
    %1194 = vmatprep.subr.mxu0 0.0
    %1195 = vmatpush1.msra.mxu0 0.0
    %1196 = vmatprep.subr.mxu0 0.0
    %1197 = vmatpush1.msra.mxu0 0.0
    %1198 = vmatprep.subr.mxu0 0.0
    %1199 = vmatpush1.msra.mxu0 0.0
    %1200 = vmatprep.subr.mxu0 0.0
    %1201 = vmatpush1.msra.mxu0 0.0
    %1202 = vmatprep.subr.mxu0 0.0
    %1203 = vmatpush1.msra.mxu0 0.0
    %1204 = vmatprep.subr.mxu0 0.0
    %1205 = vmatpush1.msra.mxu0 0.0
    %1206 = vmatprep.subr.mxu0 0.0
    %1207 = vmatpush1.msra.mxu0 0.0
    %1208 = vmatprep.subr.mxu0 0.0
    %1209 = vmatpush1.msra.mxu0 0.0
    %1210 = vmatprep.subr.mxu0 0.0
    %1211 = vmatpush1.msra.mxu0 0.0
    %1212 = vmatprep.subr.mxu0 0.0
    %1213 = vmatpush1.msra.mxu0 0.0
    %1214 = vmatprep.subr.mxu0 0.0
    %1215 = vmatpush1.msra.mxu0 0.0
    %1216 = vmatprep.subr.mxu0 0.0
    %1217 = vmatpush1.msra.mxu0 0.0
    %1218 = vmatprep.subr.mxu0 0.0
    %1219 = vmatpush1.msra.mxu0 0.0
    %1220 = vmatprep.subr.mxu0 0.0
    %1221 = vmatpush1.msra.mxu0 0.0
    %1222 = vmatprep.subr.mxu0 0.0
    %1223 = vmatpush1.msra.mxu0 0.0
    %1224 = vmatprep.subr.mxu0 0.0
    %1225 = vmatpush1.msra.mxu0 0.0
    %1226 = vmatprep.subr.mxu0 0.0
    %1227 = vmatpush1.msra.mxu0 0.0
    %1228 = vmatprep.subr.mxu0 0.0
    %1229 = vmatpush1.msra.mxu0 0.0
    %1230 = vmatprep.subr.mxu0 0.0
    %1231 = vmatpush1.msra.mxu0 0.0
    %1232 = vmatprep.subr.mxu0 0.0
    %1233 = vmatpush1.msra.mxu0 0.0
    %1234 = vmatprep.subr.mxu0 0.0
    %1235 = vmatpush1.msra.mxu0 0.0
    %1236 = vmatprep.subr.mxu0 0.0
    %1237 = vmatpush1.msra.mxu0 0.0
    %1238 = vmatprep.subr.mxu0 0.0
    %1239 = vmatpush1.msra.mxu0 0.0
    %1240 = vmatprep.subr.mxu0 0.0
    %1241 = vmatpush1.msra.mxu0 0.0
    %1242 = vmatprep.mubr.f32.mxu0 0.0
    %1243 = vmatmul.mubr.f32.gmra.mrb[0].mxu0 %v801
    %v1244 = vpop.f32.mrb[0].mxu0
    %v1245 = vadd.f32 0.0, %v1244
    %v1246 = vpop.f32.mrb[0].mxu0
    %1247 = vmatprep.mubr.f32.mxu0 0.0
    %1248 = vmatmul.mubr.f32.gmra.mrb[0].mxu0 %v804
    %v1249 = vpop.f32.mrb[0].mxu0
    %v1250 = vadd.f32 0.0, %v1249
    %v1251 = vpop.f32.mrb[0].mxu0
    %1252 = vdwg.mxu0
    %s1253 = scalar_lea.vmem %s4, 64
    %v1254 = vld [vmem:[%s1253] sm:$0xff]
    %v1255 = vld [vmem:[%s1253 + $0x8] sm:$0xff]
    %v1256 = vld [vmem:[%s1253 + $0x10] sm:$0xff]
    %v1257 = vld [vmem:[%s1253 + $0x18] sm:$0xff]
    %v1259 = vsel %vm974, %v1254, 0
    %v1262 = vsel %vm974, %v1255, 0
    %v1265 = vsel %vm974, %v1256, 0
    %v1268 = vsel %vm974, %v1257, 0
    %1270 = vmatprep.subr.mxu0 0.0
    %1271 = vmatpush1.msra.mxu0 %v1245
    %1272 = vmatprep.subr.mxu0 0.0
    %1273 = vmatpush1.msra.mxu0 %v1250
    %1274 = vmatprep.subr.mxu0 0.0
    %1275 = vmatpush1.msra.mxu0 0.0
    %1276 = vmatprep.subr.mxu0 0.0
    %1277 = vmatpush1.msra.mxu0 0.0
    %1278 = vmatprep.subr.mxu0 0.0
    %1279 = vmatpush1.msra.mxu0 0.0
    %1280 = vmatprep.subr.mxu0 0.0
    %1281 = vmatpush1.msra.mxu0 0.0
    %1282 = vmatprep.subr.mxu0 0.0
    %1283 = vmatpush1.msra.mxu0 0.0
    %1284 = vmatprep.subr.mxu0 0.0
    %1285 = vmatpush1.msra.mxu0 0.0
    %1286 = vmatprep.subr.mxu0 0.0
    %1287 = vmatpush1.msra.mxu0 0.0
    %1288 = vmatprep.subr.mxu0 0.0
    %1289 = vmatpush1.msra.mxu0 0.0
    %1290 = vmatprep.subr.mxu0 0.0
    %1291 = vmatpush1.msra.mxu0 0.0
    %1292 = vmatprep.subr.mxu0 0.0
    %1293 = vmatpush1.msra.mxu0 0.0
    %1294 = vmatprep.subr.mxu0 0.0
    %1295 = vmatpush1.msra.mxu0 0.0
    %1296 = vmatprep.subr.mxu0 0.0
    %1297 = vmatpush1.msra.mxu0 0.0
    %1298 = vmatprep.subr.mxu0 0.0
    %1299 = vmatpush1.msra.mxu0 0.0
    %1300 = vmatprep.subr.mxu0 0.0
    %1301 = vmatpush1.msra.mxu0 0.0
    %1302 = vmatprep.subr.mxu0 0.0
    %1303 = vmatpush1.msra.mxu0 0.0
    %1304 = vmatprep.subr.mxu0 0.0
    %1305 = vmatpush1.msra.mxu0 0.0
    %1306 = vmatprep.subr.mxu0 0.0
    %1307 = vmatpush1.msra.mxu0 0.0
    %1308 = vmatprep.subr.mxu0 0.0
    %1309 = vmatpush1.msra.mxu0 0.0
    %1310 = vmatprep.subr.mxu0 0.0
    %1311 = vmatpush1.msra.mxu0 0.0
    %1312 = vmatprep.subr.mxu0 0.0
    %1313 = vmatpush1.msra.mxu0 0.0
    %1314 = vmatprep.subr.mxu0 0.0
    %1315 = vmatpush1.msra.mxu0 0.0
    %1316 = vmatprep.subr.mxu0 0.0
    %1317 = vmatpush1.msra.mxu0 0.0
    %1318 = vmatprep.subr.mxu0 0.0
    %1319 = vmatpush1.msra.mxu0 0.0
    %1320 = vmatprep.subr.mxu0 0.0
    %1321 = vmatpush1.msra.mxu0 0.0
    %1322 = vmatprep.subr.mxu0 0.0
    %1323 = vmatpush1.msra.mxu0 0.0
    %1324 = vmatprep.subr.mxu0 0.0
    %1325 = vmatpush1.msra.mxu0 0.0
    %1326 = vmatprep.subr.mxu0 0.0
    %1327 = vmatpush1.msra.mxu0 0.0
    %1328 = vmatprep.subr.mxu0 0.0
    %1329 = vmatpush1.msra.mxu0 0.0
    %1330 = vmatprep.subr.mxu0 0.0
    %1331 = vmatpush1.msra.mxu0 0.0
    %1332 = vmatprep.subr.mxu0 0.0
    %1333 = vmatpush1.msra.mxu0 0.0
    %1334 = vmatprep.mubr.f32.mxu0 0.0
    %1335 = vmatmul.mubr.f32.gmra.mrb[0].mxu0 %v1259
    %v1336 = vpop.f32.mrb[0].mxu0
    %v1337 = vadd.f32 0.0, %v1336
    %v1338 = vpop.f32.mrb[0].mxu0
    %1339 = vmatprep.mubr.f32.mxu0 0.0
    %1340 = vmatmul.mubr.f32.gmra.mrb[0].mxu0 %v1262
    %v1341 = vpop.f32.mrb[0].mxu0
    %v1342 = vadd.f32 0.0, %v1341
    %v1343 = vpop.f32.mrb[0].mxu0
    %1344 = vmatprep.mubr.f32.mxu0 0.0
    %1345 = vmatmul.mubr.f32.gmra.mrb[0].mxu0 %v1265
    %v1346 = vpop.f32.mrb[0].mxu0
    %v1347 = vadd.f32 0.0, %v1346
    %v1348 = vpop.f32.mrb[0].mxu0
    %1349 = vmatprep.mubr.f32.mxu0 0.0
    %1350 = vmatmul.mubr.f32.gmra.mrb[0].mxu0 %v1268
    %v1351 = vpop.f32.mrb[0].mxu0
    %v1352 = vadd.f32 0.0, %v1351
    %v1353 = vpop.f32.mrb[0].mxu0
    %1354 = vdwg.mxu0
    %v1355 = vadd.f32 %v1151, %v1337
    %v1356 = vadd.f32 %v1156, %v1342
    %v1357 = vadd.f32 %v1161, %v1347
    %v1358 = vadd.f32 %v1166, %v1352
    %v1359 = vsel %vm70, %v1355, 0.0
    %v1360 = vsel %vm70, %v1356, 0.0
    %v1361 = vadd.f32 %v1359, %v1360
    %v1362 = vsel %vm70, %v1357, 0.0
    %v1363 = vadd.f32 %v1361, %v1362
    %v1364 = vsel %vm70, %v1358, 0.0
    %v1365 = vadd.f32 %v1363, %v1364
    %v1366 = vrot.slane %v1365, 4
    %v1367 = vadd.f32 %v1365, %v1366
    %v1368 = vrot.slane %v1367, 2
    %v1369 = vadd.f32 %v1367, %v1368
    %v1370 = vrot.slane %v1369, 1
    %v1371 = vadd.f32 %v1369, %v1370
    %v1372 = vld [vmem:[%s5] sm:$0xff]
    %v1373 = vld [vmem:[%s5 + $0x8] sm:$0xff]
    %v1374 = vld [vmem:[%s5 + $0x10] sm:$0xff]
    %v1375 = vld [vmem:[%s5 + $0x18] sm:$0xff]
    %v1376 = vld [vmem:[%s5 + $0x20] sm:$0xff]
    %v1377 = vld [vmem:[%s5 + $0x28] sm:$0xff]
    %v1378 = vld [vmem:[%s5 + $0x30] sm:$0xff]
    %v1379 = vld [vmem:[%s5 + $0x38] sm:$0xff]
    %v1381 = vsel %vm70, %v1371, 0
    %1383 = vmatprep.subr.mxu0 0.0
    %1384 = vmatpush1.msra.mxu0 %v1372
    %1385 = vmatprep.subr.mxu0 0.0
    %1386 = vmatpush1.msra.mxu0 %v1373
    %1387 = vmatprep.subr.mxu0 0.0
    %1388 = vmatpush1.msra.mxu0 %v1374
    %1389 = vmatprep.subr.mxu0 0.0
    %1390 = vmatpush1.msra.mxu0 %v1375
    %1391 = vmatprep.subr.mxu0 0.0
    %1392 = vmatpush1.msra.mxu0 %v1376
    %1393 = vmatprep.subr.mxu0 0.0
    %1394 = vmatpush1.msra.mxu0 %v1377
    %1395 = vmatprep.subr.mxu0 0.0
    %1396 = vmatpush1.msra.mxu0 %v1378
    %1397 = vmatprep.subr.mxu0 0.0
    %1398 = vmatpush1.msra.mxu0 %v1379
    %1399 = vmatprep.subr.mxu0 0.0
    %1400 = vmatpush1.msra.mxu0 0.0
    %1401 = vmatprep.subr.mxu0 0.0
    %1402 = vmatpush1.msra.mxu0 0.0
    %1403 = vmatprep.subr.mxu0 0.0
    %1404 = vmatpush1.msra.mxu0 0.0
    %1405 = vmatprep.subr.mxu0 0.0
    %1406 = vmatpush1.msra.mxu0 0.0
    %1407 = vmatprep.subr.mxu0 0.0
    %1408 = vmatpush1.msra.mxu0 0.0
    %1409 = vmatprep.subr.mxu0 0.0
    %1410 = vmatpush1.msra.mxu0 0.0
    %1411 = vmatprep.subr.mxu0 0.0
    %1412 = vmatpush1.msra.mxu0 0.0
    %1413 = vmatprep.subr.mxu0 0.0
    %1414 = vmatpush1.msra.mxu0 0.0
    %1415 = vmatprep.subr.mxu0 0.0
    %1416 = vmatpush1.msra.mxu0 0.0
    %1417 = vmatprep.subr.mxu0 0.0
    %1418 = vmatpush1.msra.mxu0 0.0
    %1419 = vmatprep.subr.mxu0 0.0
    %1420 = vmatpush1.msra.mxu0 0.0
    %1421 = vmatprep.subr.mxu0 0.0
    %1422 = vmatpush1.msra.mxu0 0.0
    %1423 = vmatprep.subr.mxu0 0.0
    %1424 = vmatpush1.msra.mxu0 0.0
    %1425 = vmatprep.subr.mxu0 0.0
    %1426 = vmatpush1.msra.mxu0 0.0
    %1427 = vmatprep.subr.mxu0 0.0
    %1428 = vmatpush1.msra.mxu0 0.0
    %1429 = vmatprep.subr.mxu0 0.0
    %1430 = vmatpush1.msra.mxu0 0.0
    %1431 = vmatprep.subr.mxu0 0.0
    %1432 = vmatpush1.msra.mxu0 0.0
    %1433 = vmatprep.subr.mxu0 0.0
    %1434 = vmatpush1.msra.mxu0 0.0
    %1435 = vmatprep.subr.mxu0 0.0
    %1436 = vmatpush1.msra.mxu0 0.0
    %1437 = vmatprep.subr.mxu0 0.0
    %1438 = vmatpush1.msra.mxu0 0.0
    %1439 = vmatprep.subr.mxu0 0.0
    %1440 = vmatpush1.msra.mxu0 0.0
    %1441 = vmatprep.subr.mxu0 0.0
    %1442 = vmatpush1.msra.mxu0 0.0
    %1443 = vmatprep.subr.mxu0 0.0
    %1444 = vmatpush1.msra.mxu0 0.0
    %1445 = vmatprep.subr.mxu0 0.0
    %1446 = vmatpush1.msra.mxu0 0.0
    %1447 = vmatprep.mubr.f32.mxu0 0.0
    %1448 = vmatmul.mubr.f32.gmra.mrb[0].mxu0 %v1381
    %v1449 = vpop.f32.mrb[0].mxu0
    %v1450 = vadd.f32 0.0, %v1449
    %v1451 = vpop.f32.mrb[0].mxu0
    %1452 = vdwg.mxu0
    %v1453 = vmul.f32 %v1450, 0.001953125
    %v1454 = vld [vmem:[%s6] sm:$0xf]
    %vm1455 = vcmask 31744
    %v1457 = vsel %vm1455, %v1453, 0
    %vm1459 = vcmask 1043456
    %v1461 = vsel %vm1459, %v1454, 0
    %1463 = vmatprep.subr.mxu0 0.0
    %1464 = vmatpush1.msra.mxu0 %v1461
    %1465 = vmatprep.subr.mxu0 0.0
    %1466 = vmatpush1.msra.mxu0 0.0
    %1467 = vmatprep.subr.mxu0 0.0
    %1468 = vmatpush1.msra.mxu0 0.0
    %1469 = vmatprep.subr.mxu0 0.0
    %1470 = vmatpush1.msra.mxu0 0.0
    %1471 = vmatprep.subr.mxu0 0.0
    %1472 = vmatpush1.msra.mxu0 0.0
    %1473 = vmatprep.subr.mxu0 0.0
    %1474 = vmatpush1.msra.mxu0 0.0
    %1475 = vmatprep.subr.mxu0 0.0
    %1476 = vmatpush1.msra.mxu0 0.0
    %1477 = vmatprep.subr.mxu0 0.0
    %1478 = vmatpush1.msra.mxu0 0.0
    %1479 = vmatprep.subr.mxu0 0.0
    %1480 = vmatpush1.msra.mxu0 0.0
    %1481 = vmatprep.subr.mxu0 0.0
    %1482 = vmatpush1.msra.mxu0 0.0
    %1483 = vmatprep.subr.mxu0 0.0
    %1484 = vmatpush1.msra.mxu0 0.0
    %1485 = vmatprep.subr.mxu0 0.0
    %1486 = vmatpush1.msra.mxu0 0.0
    %1487 = vmatprep.subr.mxu0 0.0
    %1488 = vmatpush1.msra.mxu0 0.0
    %1489 = vmatprep.subr.mxu0 0.0
    %1490 = vmatpush1.msra.mxu0 0.0
    %1491 = vmatprep.subr.mxu0 0.0
    %1492 = vmatpush1.msra.mxu0 0.0
    %1493 = vmatprep.subr.mxu0 0.0
    %1494 = vmatpush1.msra.mxu0 0.0
    %1495 = vmatprep.subr.mxu0 0.0
    %1496 = vmatpush1.msra.mxu0 0.0
    %1497 = vmatprep.subr.mxu0 0.0
    %1498 = vmatpush1.msra.mxu0 0.0
    %1499 = vmatprep.subr.mxu0 0.0
    %1500 = vmatpush1.msra.mxu0 0.0
    %1501 = vmatprep.subr.mxu0 0.0
    %1502 = vmatpush1.msra.mxu0 0.0
    %1503 = vmatprep.subr.mxu0 0.0
    %1504 = vmatpush1.msra.mxu0 0.0
    %1505 = vmatprep.subr.mxu0 0.0
    %1506 = vmatpush1.msra.mxu0 0.0
    %1507 = vmatprep.subr.mxu0 0.0
    %1508 = vmatpush1.msra.mxu0 0.0
    %1509 = vmatprep.subr.mxu0 0.0
    %1510 = vmatpush1.msra.mxu0 0.0
    %1511 = vmatprep.subr.mxu0 0.0
    %1512 = vmatpush1.msra.mxu0 0.0
    %1513 = vmatprep.subr.mxu0 0.0
    %1514 = vmatpush1.msra.mxu0 0.0
    %1515 = vmatprep.subr.mxu0 0.0
    %1516 = vmatpush1.msra.mxu0 0.0
    %1517 = vmatprep.subr.mxu0 0.0
    %1518 = vmatpush1.msra.mxu0 0.0
    %1519 = vmatprep.subr.mxu0 0.0
    %1520 = vmatpush1.msra.mxu0 0.0
    %1521 = vmatprep.subr.mxu0 0.0
    %1522 = vmatpush1.msra.mxu0 0.0
    %1523 = vmatprep.subr.mxu0 0.0
    %1524 = vmatpush1.msra.mxu0 0.0
    %1525 = vmatprep.subr.mxu0 0.0
    %1526 = vmatpush1.msra.mxu0 0.0
    %1527 = vmatprep.mubr.f32.mxu0 0.0
    %1528 = vmatmul.mubr.f32.gmra.mrb[0].mxu0 %v1457
    %v1529 = vpop.f32.mrb[0].mxu0
    %v1530 = vadd.f32 0.0, %v1529
    %v1531 = vpop.f32.mrb[0].mxu0
    %1532 = vdwg.mxu0
    %v1533 = vlaneseq
    %v1534 = vshrl.u32 %v1533, 7
    %v1535 = vsub.s32 0, %v1534
    %v1536 = vrot.slane %v1530, %v1535
    %v1537 = vsub.f32 %v1355, %v1536
    %v1538 = vsub.f32 %v1356, %v1536
    %v1539 = vsub.f32 %v1357, %v1536
    %v1540 = vsub.f32 %v1358, %v1536
    %v1541 = vmul.f32 %v1537, %v1537
    %v1542 = vmul.f32 %v1538, %v1538
    %v1543 = vmul.f32 %v1539, %v1539
    %v1544 = vmul.f32 %v1540, %v1540
    %v1545 = vsel %vm70, %v1541, 0.0
    %v1546 = vsel %vm70, %v1542, 0.0
    %v1547 = vadd.f32 %v1545, %v1546
    %v1548 = vsel %vm70, %v1543, 0.0
    %v1549 = vadd.f32 %v1547, %v1548
    %v1550 = vsel %vm70, %v1544, 0.0
    %v1551 = vadd.f32 %v1549, %v1550
    %v1552 = vrot.slane %v1551, 4
    %v1553 = vadd.f32 %v1551, %v1552
    %v1554 = vrot.slane %v1553, 2
    %v1555 = vadd.f32 %v1553, %v1554
    %v1556 = vrot.slane %v1555, 1
    %v1557 = vadd.f32 %v1555, %v1556
    %v1559 = vsel %vm70, %v1557, 0
    %1561 = vmatprep.subr.mxu0 0.0
    %1562 = vmatpush1.msra.mxu0 %v1372
    %1563 = vmatprep.subr.mxu0 0.0
    %1564 = vmatpush1.msra.mxu0 %v1373
    %1565 = vmatprep.subr.mxu0 0.0
    %1566 = vmatpush1.msra.mxu0 %v1374
    %1567 = vmatprep.subr.mxu0 0.0
    %1568 = vmatpush1.msra.mxu0 %v1375
    %1569 = vmatprep.subr.mxu0 0.0
    %1570 = vmatpush1.msra.mxu0 %v1376
    %1571 = vmatprep.subr.mxu0 0.0
    %1572 = vmatpush1.msra.mxu0 %v1377
    %1573 = vmatprep.subr.mxu0 0.0
    %1574 = vmatpush1.msra.mxu0 %v1378
    %1575 = vmatprep.subr.mxu0 0.0
    %1576 = vmatpush1.msra.mxu0 %v1379
    %1577 = vmatprep.subr.mxu0 0.0
    %1578 = vmatpush1.msra.mxu0 0.0
    %1579 = vmatprep.subr.mxu0 0.0
    %1580 = vmatpush1.msra.mxu0 0.0
    %1581 = vmatprep.subr.mxu0 0.0
    %1582 = vmatpush1.msra.mxu0 0.0
    %1583 = vmatprep.subr.mxu0 0.0
    %1584 = vmatpush1.msra.mxu0 0.0
    %1585 = vmatprep.subr.mxu0 0.0
    %1586 = vmatpush1.msra.mxu0 0.0
    %1587 = vmatprep.subr.mxu0 0.0
    %1588 = vmatpush1.msra.mxu0 0.0
    %1589 = vmatprep.subr.mxu0 0.0
    %1590 = vmatpush1.msra.mxu0 0.0
    %1591 = vmatprep.subr.mxu0 0.0
    %1592 = vmatpush1.msra.mxu0 0.0
    %1593 = vmatprep.subr.mxu0 0.0
    %1594 = vmatpush1.msra.mxu0 0.0
    %1595 = vmatprep.subr.mxu0 0.0
    %1596 = vmatpush1.msra.mxu0 0.0
    %1597 = vmatprep.subr.mxu0 0.0
    %1598 = vmatpush1.msra.mxu0 0.0
    %1599 = vmatprep.subr.mxu0 0.0
    %1600 = vmatpush1.msra.mxu0 0.0
    %1601 = vmatprep.subr.mxu0 0.0
    %1602 = vmatpush1.msra.mxu0 0.0
    %1603 = vmatprep.subr.mxu0 0.0
    %1604 = vmatpush1.msra.mxu0 0.0
    %1605 = vmatprep.subr.mxu0 0.0
    %1606 = vmatpush1.msra.mxu0 0.0
    %1607 = vmatprep.subr.mxu0 0.0
    %1608 = vmatpush1.msra.mxu0 0.0
    %1609 = vmatprep.subr.mxu0 0.0
    %1610 = vmatpush1.msra.mxu0 0.0
    %1611 = vmatprep.subr.mxu0 0.0
    %1612 = vmatpush1.msra.mxu0 0.0
    %1613 = vmatprep.subr.mxu0 0.0
    %1614 = vmatpush1.msra.mxu0 0.0
    %1615 = vmatprep.subr.mxu0 0.0
    %1616 = vmatpush1.msra.mxu0 0.0
    %1617 = vmatprep.subr.mxu0 0.0
    %1618 = vmatpush1.msra.mxu0 0.0
    %1619 = vmatprep.subr.mxu0 0.0
    %1620 = vmatpush1.msra.mxu0 0.0
    %1621 = vmatprep.subr.mxu0 0.0
    %1622 = vmatpush1.msra.mxu0 0.0
    %1623 = vmatprep.subr.mxu0 0.0
    %1624 = vmatpush1.msra.mxu0 0.0
    %1625 = vmatprep.mubr.f32.mxu0 0.0
    %1626 = vmatmul.mubr.f32.gmra.mrb[0].mxu0 %v1559
    %v1627 = vpop.f32.mrb[0].mxu0
    %v1628 = vadd.f32 0.0, %v1627
    %v1629 = vpop.f32.mrb[0].mxu0
    %1630 = vdwg.mxu0
    %v1631 = vmul.f32 %v1628, 0.001953125
    %v1632 = vld [vmem:[%s7] sm:$0x1]
    %v1633 = vadd.f32 %v1631, 1e-05
    %v1634 = vrsqrt.pop %v1633
    %v1635 = vmul.f32 %v1632, %v1634
    %v1637 = vsel %vm1455, %v1635, 0
    %1639 = vmatprep.subr.mxu0 0.0
    %1640 = vmatpush1.msra.mxu0 %v1461
    %1641 = vmatprep.subr.mxu0 0.0
    %1642 = vmatpush1.msra.mxu0 0.0
    %1643 = vmatprep.subr.mxu0 0.0
    %1644 = vmatpush1.msra.mxu0 0.0
    %1645 = vmatprep.subr.mxu0 0.0
    %1646 = vmatpush1.msra.mxu0 0.0
    %1647 = vmatprep.subr.mxu0 0.0
    %1648 = vmatpush1.msra.mxu0 0.0
    %1649 = vmatprep.subr.mxu0 0.0
    %1650 = vmatpush1.msra.mxu0 0.0
    %1651 = vmatprep.subr.mxu0 0.0
    %1652 = vmatpush1.msra.mxu0 0.0
    %1653 = vmatprep.subr.mxu0 0.0
    %1654 = vmatpush1.msra.mxu0 0.0
    %1655 = vmatprep.subr.mxu0 0.0
    %1656 = vmatpush1.msra.mxu0 0.0
    %1657 = vmatprep.subr.mxu0 0.0
    %1658 = vmatpush1.msra.mxu0 0.0
    %1659 = vmatprep.subr.mxu0 0.0
    %1660 = vmatpush1.msra.mxu0 0.0
    %1661 = vmatprep.subr.mxu0 0.0
    %1662 = vmatpush1.msra.mxu0 0.0
    %1663 = vmatprep.subr.mxu0 0.0
    %1664 = vmatpush1.msra.mxu0 0.0
    %1665 = vmatprep.subr.mxu0 0.0
    %1666 = vmatpush1.msra.mxu0 0.0
    %1667 = vmatprep.subr.mxu0 0.0
    %1668 = vmatpush1.msra.mxu0 0.0
    %1669 = vmatprep.subr.mxu0 0.0
    %1670 = vmatpush1.msra.mxu0 0.0
    %1671 = vmatprep.subr.mxu0 0.0
    %1672 = vmatpush1.msra.mxu0 0.0
    %1673 = vmatprep.subr.mxu0 0.0
    %1674 = vmatpush1.msra.mxu0 0.0
    %1675 = vmatprep.subr.mxu0 0.0
    %1676 = vmatpush1.msra.mxu0 0.0
    %1677 = vmatprep.subr.mxu0 0.0
    %1678 = vmatpush1.msra.mxu0 0.0
    %1679 = vmatprep.subr.mxu0 0.0
    %1680 = vmatpush1.msra.mxu0 0.0
    %1681 = vmatprep.subr.mxu0 0.0
    %1682 = vmatpush1.msra.mxu0 0.0
    %1683 = vmatprep.subr.mxu0 0.0
    %1684 = vmatpush1.msra.mxu0 0.0
    %1685 = vmatprep.subr.mxu0 0.0
    %1686 = vmatpush1.msra.mxu0 0.0
    %1687 = vmatprep.subr.mxu0 0.0
    %1688 = vmatpush1.msra.mxu0 0.0
    %1689 = vmatprep.subr.mxu0 0.0
    %1690 = vmatpush1.msra.mxu0 0.0
    %1691 = vmatprep.subr.mxu0 0.0
    %1692 = vmatpush1.msra.mxu0 0.0
    %1693 = vmatprep.subr.mxu0 0.0
    %1694 = vmatpush1.msra.mxu0 0.0
    %1695 = vmatprep.subr.mxu0 0.0
    %1696 = vmatpush1.msra.mxu0 0.0
    %1697 = vmatprep.subr.mxu0 0.0
    %1698 = vmatpush1.msra.mxu0 0.0
    %1699 = vmatprep.subr.mxu0 0.0
    %1700 = vmatpush1.msra.mxu0 0.0
    %1701 = vmatprep.subr.mxu0 0.0
    %1702 = vmatpush1.msra.mxu0 0.0
    %1703 = vmatprep.mubr.f32.mxu0 0.0
    %1704 = vmatmul.mubr.f32.gmra.mrb[0].mxu0 %v1637
    %v1705 = vpop.f32.mrb[0].mxu0
    %v1706 = vadd.f32 0.0, %v1705
    %v1707 = vpop.f32.mrb[0].mxu0
    %1708 = vdwg.mxu0
    %v1709 = vlaneseq
    %v1710 = vshrl.u32 %v1709, 7
    %v1711 = vsub.s32 0, %v1710
    %v1712 = vrot.slane %v1706, %v1711
    %v1713 = vmul.f32 %v1537, %v1712
    %v1714 = vmul.f32 %v1538, %v1712
    %v1715 = vmul.f32 %v1539, %v1712
    %v1716 = vmul.f32 %v1540, %v1712
    %v1717 = vld [vmem:[%s8] sm:$0x1]
    %v1719 = vsel %vm1455, %v1717, 0
    %1721 = vmatprep.subr.mxu0 0.0
    %1722 = vmatpush1.msra.mxu0 %v1461
    %1723 = vmatprep.subr.mxu0 0.0
    %1724 = vmatpush1.msra.mxu0 0.0
    %1725 = vmatprep.subr.mxu0 0.0
    %1726 = vmatpush1.msra.mxu0 0.0
    %1727 = vmatprep.subr.mxu0 0.0
    %1728 = vmatpush1.msra.mxu0 0.0
    %1729 = vmatprep.subr.mxu0 0.0
    %1730 = vmatpush1.msra.mxu0 0.0
    %1731 = vmatprep.subr.mxu0 0.0
    %1732 = vmatpush1.msra.mxu0 0.0
    %1733 = vmatprep.subr.mxu0 0.0
    %1734 = vmatpush1.msra.mxu0 0.0
    %1735 = vmatprep.subr.mxu0 0.0
    %1736 = vmatpush1.msra.mxu0 0.0
    %1737 = vmatprep.subr.mxu0 0.0
    %1738 = vmatpush1.msra.mxu0 0.0
    %1739 = vmatprep.subr.mxu0 0.0
    %1740 = vmatpush1.msra.mxu0 0.0
    %1741 = vmatprep.subr.mxu0 0.0
    %1742 = vmatpush1.msra.mxu0 0.0
    %1743 = vmatprep.subr.mxu0 0.0
    %1744 = vmatpush1.msra.mxu0 0.0
    %1745 = vmatprep.subr.mxu0 0.0
    %1746 = vmatpush1.msra.mxu0 0.0
    %1747 = vmatprep.subr.mxu0 0.0
    %1748 = vmatpush1.msra.mxu0 0.0
    %1749 = vmatprep.subr.mxu0 0.0
    %1750 = vmatpush1.msra.mxu0 0.0
    %1751 = vmatprep.subr.mxu0 0.0
    %1752 = vmatpush1.msra.mxu0 0.0
    %1753 = vmatprep.subr.mxu0 0.0
    %1754 = vmatpush1.msra.mxu0 0.0
    %1755 = vmatprep.subr.mxu0 0.0
    %1756 = vmatpush1.msra.mxu0 0.0
    %1757 = vmatprep.subr.mxu0 0.0
    %1758 = vmatpush1.msra.mxu0 0.0
    %1759 = vmatprep.subr.mxu0 0.0
    %1760 = vmatpush1.msra.mxu0 0.0
    %1761 = vmatprep.subr.mxu0 0.0
    %1762 = vmatpush1.msra.mxu0 0.0
    %1763 = vmatprep.subr.mxu0 0.0
    %1764 = vmatpush1.msra.mxu0 0.0
    %1765 = vmatprep.subr.mxu0 0.0
    %1766 = vmatpush1.msra.mxu0 0.0
    %1767 = vmatprep.subr.mxu0 0.0
    %1768 = vmatpush1.msra.mxu0 0.0
    %1769 = vmatprep.subr.mxu0 0.0
    %1770 = vmatpush1.msra.mxu0 0.0
    %1771 = vmatprep.subr.mxu0 0.0
    %1772 = vmatpush1.msra.mxu0 0.0
    %1773 = vmatprep.subr.mxu0 0.0
    %1774 = vmatpush1.msra.mxu0 0.0
    %1775 = vmatprep.subr.mxu0 0.0
    %1776 = vmatpush1.msra.mxu0 0.0
    %1777 = vmatprep.subr.mxu0 0.0
    %1778 = vmatpush1.msra.mxu0 0.0
    %1779 = vmatprep.subr.mxu0 0.0
    %1780 = vmatpush1.msra.mxu0 0.0
    %1781 = vmatprep.subr.mxu0 0.0
    %1782 = vmatpush1.msra.mxu0 0.0
    %1783 = vmatprep.subr.mxu0 0.0
    %1784 = vmatpush1.msra.mxu0 0.0
    %1785 = vmatprep.mubr.f32.mxu0 0.0
    %1786 = vmatmul.mubr.f32.gmra.mrb[0].mxu0 %v1719
    %v1787 = vpop.f32.mrb[0].mxu0
    %v1788 = vadd.f32 0.0, %v1787
    %v1789 = vpop.f32.mrb[0].mxu0
    %1790 = vdwg.mxu0
    %v1791 = vlaneseq
    %v1792 = vshrl.u32 %v1791, 7
    %v1793 = vsub.s32 0, %v1792
    %v1794 = vrot.slane %v1788, %v1793
    %v1795 = vadd.f32 %v1713, %v1794
    %v1796 = vadd.f32 %v1714, %v1794
    %v1797 = vadd.f32 %v1715, %v1794
    %v1798 = vadd.f32 %v1716, %v1794
    %1799 = vst.msk [vmem:[%s9] sm:$0xff] %vm70, %v46
    %1800 = vst.msk [vmem:[%s9 + $0x8] sm:$0xff] %vm70, %v47
    %1801 = vst.msk [vmem:[%s9 + $0x10] sm:$0xff] %vm70, %v48
    %1802 = vst.msk [vmem:[%s9 + $0x18] sm:$0xff] %vm70, %v49
    %1807 = vrot.lane.b32.xlu0 %v1795, 64
    %v1808 = vpop.permute.xlu0 %1807
    %1809 = vrot.lane.b32.xlu0 %v1796, 64
    %v1810 = vpop.permute.xlu0 %1809
    %1811 = vrot.lane.b32.xlu0 %v1797, 64
    %v1812 = vpop.permute.xlu0 %1811
    %1813 = vrot.lane.b32.xlu0 %v1798, 64
    %v1814 = vpop.permute.xlu0 %1813
    %vm1819 = vcmask 1048064
    %1820 = vst.msk [vmem:[%s9] sm:$0xff] %vm1819, %v1808
    %1821 = vst.msk [vmem:[%s9 + $0x8] sm:$0xff] %vm1819, %v1810
    %1822 = vst.msk [vmem:[%s9 + $0x10] sm:$0xff] %vm1819, %v1812
    %1823 = vst.msk [vmem:[%s9 + $0x18] sm:$0xff] %vm1819, %v1814
    // Predicated region
    $region42: #{unet_skip_block.1} parent=1 // pred_check
      _
    $region43: #{unet_skip_block.1} parent=1 // pred_check_branch
      %1825 = sbr.rel (0) target = $region45
    $region44: #{unet_skip_block.1} parent=1 // pred_region
      _
    $region45: #{unet_skip_block.1} parent=1 // pred_fallthru
      _
    // Predicated region
    $region46: #{unet_skip_block.1} parent=1 // pred_check
      _
    $region47: #{unet_skip_block.1} parent=1 // pred_check_branch
      %1827 = sbr.rel (0) target = $region49
    $region48: #{unet_skip_block.1} parent=1 // pred_region
      _
    $region49: #{unet_skip_block.1} parent=1 // pred_fallthru
      _
    %1828 = vsyncpa [#allocation3], 1

</llo_original>
